<compile_context>
chip_gen: v7x
topology: tpu7x:2x2x1
jax: 0.10.0
libtpu: 0.0.40
codegen_flags: <defaults>
</compile_context>

<pallas_src>
import functools

import jax
import jax.numpy as jnp
from jax.experimental import pallas as pl
from jax.experimental.pallas import tpu as pltpu


# ---------------------------------------------------------------------------
# Fused kernel: one grid step per GRU layer, in-kernel (unrolled) time loop.
# ---------------------------------------------------------------------------
def _make_char_rnn_kernel(T, Bp, Hp, Vp):
    G3 = 3 * Hp

    def kernel(x_ref, w_ih_ref, w_hh_ref, b_ih_ref, b_hh_ref,
               fc_w_ref, fc_b_ref, logits_ref, hidden_ref, act_scr, gi_scr):
        l = pl.program_id(0)
        n_layers = pl.num_programs(0)

        # Layer 0 reads the embedded input; later layers read the previous
        # layer's activation sequence left in persistent VMEM scratch.
        @pl.when(l == 0)
        def _():
            act_scr[...] = x_ref[...]

        # Hoisted input projection for ALL timesteps at once (b_ih folded in):
        # one big MXU matmul off the serial critical path.
        gi_scr[...] = (
            jnp.dot(act_scr[...], w_ih_ref[0], preferred_element_type=jnp.float32)
            + b_ih_ref[0])

        # TODO(synk): verify in the bundle dump that Mosaic keeps this (Hp, 3Hp)
        # RHS resident across the unrolled steps; otherwise drive the MXU with
        # pltpu.matmul_push_rhs / matmul_acc_lhs / matmul_pop explicitly.
        w_hh = w_hh_ref[0]                                   # (Hp, 3Hp)
        b_hh = jnp.broadcast_to(b_hh_ref[0], (Bp, G3))       # hoisted once/layer

        h = jnp.zeros((Bp, Hp), jnp.float32)   # PyTorch hidden=None -> zeros
        # Serial recurrence; T is small & static -> full unroll.  All slice
        # starts (t*Bp) are static multiples of 8 -> aligned (8,128) tiles.
        for t in range(T):
            gi_t = gi_scr[pl.ds(t * Bp, Bp), :]              # (Bp, 3Hp)
            gh = jnp.dot(h, w_hh, preferred_element_type=jnp.float32) + b_hh
            # PyTorch gate order [r, z, n]; each gate is one 128-lane block.
            rz = jax.nn.sigmoid(gi_t[:, :2 * Hp] + gh[:, :2 * Hp])
            r, z = rz[:, :Hp], rz[:, Hp:]
            n = jnp.tanh(gi_t[:, 2 * Hp:] + r * gh[:, 2 * Hp:])
            h = n + z * (h - n)                # == (1-z)*n + z*h, one fewer mul
            act_scr[pl.ds(t * Bp, Bp), :] = h  # feeds the next layer's projection

        hidden_ref[0] = h                      # lane-dense (Bp, Hp) store

        @pl.when(l == n_layers - 1)
        def _():
            logits_ref[...] = (
                jnp.dot(h, fc_w_ref[...], preferred_element_type=jnp.float32)
                + fc_b_ref[...])

    return kernel


# ---------------------------------------------------------------------------
# Parameter preparation: transpose + gate-wise lane padding + stacking, ONCE.
# ---------------------------------------------------------------------------
def prepare_params(params, embed_dim, hidden_dim, lane=128):
    H = hidden_dim
    Hp = -(-H // lane) * lane                 # hidden padded to 128 lanes
    V = params["fc_b"].shape[0]
    Vp = -(-V // lane) * lane                 # vocab padded to 128 lanes
    assert embed_dim <= Hp, "embed_dim must fit in the padded hidden width"

    def gate_pad_cols(w):                     # (rows, 3H) -> (rows, 3Hp) per-gate
        rows = w.shape[0]
        out = jnp.zeros((rows, 3 * Hp), jnp.float32)
        for g in range(3):
            out = out.at[:, g * Hp:g * Hp + H].set(w[:, g * H:(g + 1) * H])
        return out

    def pad_to(w, shape):
        out = jnp.zeros(shape, jnp.float32)
        return out.at[tuple(slice(0, s) for s in w.shape)].set(w)

    w_ih_l, w_hh_l, b_ih_l, b_hh_l = [], [], [], []
    for p in params["gru"]:
        w_ih_l.append(pad_to(gate_pad_cols(jnp.transpose(p["w_ih"])), (Hp, 3 * Hp)))
        w_hh_l.append(pad_to(gate_pad_cols(jnp.transpose(p["w_hh"])), (Hp, 3 * Hp)))
        b_ih_l.append(gate_pad_cols(p["b_ih"].reshape(1, -1)))
        b_hh_l.append(gate_pad_cols(p["b_hh"].reshape(1, -1)))

    return {
        "embed": params["embed"].astype(jnp.float32),
        "w_ih": jnp.stack(w_ih_l),                                  # (L, Hp, 3Hp)
        "w_hh": jnp.stack(w_hh_l),                                  # (L, Hp, 3Hp)
        "b_ih": jnp.stack(b_ih_l),                                  # (L, 1, 3Hp)
        "b_hh": jnp.stack(b_hh_l),                                  # (L, 1, 3Hp)
        "fc_w": pad_to(jnp.transpose(params["fc_w"]), (Hp, Vp)),    # (Hp, Vp)
        "fc_b": pad_to(params["fc_b"].reshape(1, -1), (1, Vp)),     # (1, Vp)
    }


# ---------------------------------------------------------------------------
# Forward pass
# ---------------------------------------------------------------------------
@functools.partial(jax.jit, static_argnames=("num_layers", "hidden_dim", "vocab_size"))
def char_rnn_forward(prepared, x_tokens, num_layers, hidden_dim, vocab_size):
    """x_tokens: (B, T) int32 -> (logits (B, V), hidden (L, B, H))."""
    B, T = x_tokens.shape
    Bp = max(8, -(-B // 8) * 8)               # f32 sublane pad
    H = hidden_dim
    Hp = prepared["w_hh"].shape[1]
    G3 = 3 * Hp
    Vp = prepared["fc_w"].shape[1]
    L = num_layers

    # TODO(synk): embedding gather stays in plain JAX (jnp.take glue); a DMA-gather
    # Pallas kernel adds nothing at these sizes.
    emb = jnp.take(prepared["embed"], x_tokens, axis=0)             # (B, T, E)
    E = emb.shape[-1]
    emb_p = jnp.zeros((Bp, T, E), jnp.float32).at[:B].set(emb)      # zero-fill pad rows
    # Time-major rows: row t*Bp + b.  Lane-pad E -> Hp so the layer-0 input
    # matches the row-padded stacked w_ih.
    x2d = jnp.zeros((T * Bp, Hp), jnp.float32).at[:, :E].set(
        jnp.transpose(emb_p, (1, 0, 2)).reshape(T * Bp, E))

    kernel = _make_char_rnn_kernel(T, Bp, Hp, Vp)

    logits_p, hidden_p = pl.pallas_call(
        kernel,
        out_shape=(jax.ShapeDtypeStruct((Bp, Vp), jnp.float32),
                   jax.ShapeDtypeStruct((L, Bp, Hp), jnp.float32)),
        grid_spec=pltpu.PrefetchScalarGridSpec(
            num_scalar_prefetch=0,
            grid=(L,),
            in_specs=[
                pl.BlockSpec((T * Bp, Hp), lambda l: (0, 0)),       # x2d
                pl.BlockSpec((1, Hp, G3), lambda l: (l, 0, 0)),     # w_ih (stacked)
                pl.BlockSpec((1, Hp, G3), lambda l: (l, 0, 0)),     # w_hh (stacked)
                pl.BlockSpec((1, 1, G3), lambda l: (l, 0, 0)),      # b_ih
                pl.BlockSpec((1, 1, G3), lambda l: (l, 0, 0)),      # b_hh
                pl.BlockSpec((Hp, Vp), lambda l: (0, 0)),           # fc_w
                pl.BlockSpec((1, Vp), lambda l: (0, 0)),            # fc_b
            ],
            out_specs=[
                pl.BlockSpec((Bp, Vp), lambda l: (0, 0)),           # logits (lane-dense)
                pl.BlockSpec((1, Bp, Hp), lambda l: (l, 0, 0)),     # hidden (lane-dense)
            ],
            scratch_shapes=[
                pltpu.VMEM((T * Bp, Hp), jnp.float32),              # act_scr
                pltpu.VMEM((T * Bp, G3), jnp.float32),              # gi_scr
            ],
        ),
        compiler_params=pltpu.CompilerParams(
            dimension_semantics=("arbitrary",)),                    # layers are serial
    )(x2d, prepared["w_ih"], prepared["w_hh"], prepared["b_ih"],
      prepared["b_hh"], prepared["fc_w"], prepared["fc_b"])

    # Slice padded batch rows / lanes back off (free XLA plumbing).
    return logits_p[:B, :vocab_size], hidden_p[:, :B, :H]


# ---------------------------------------------------------------------------
# Param init (PyTorch layouts) and a pure-JAX reference for validation.
# ---------------------------------------------------------------------------
def init_params(key, vocab_size, embed_dim, hidden_dim, num_layers):
    keys = jax.random.split(key, 3 + 4 * num_layers)
    scale = 0.1
    params = {
        "embed": scale * jax.random.normal(keys[0], (vocab_size, embed_dim), jnp.float32),
        "fc_w": scale * jax.random.normal(keys[1], (vocab_size, hidden_dim), jnp.float32),
        "fc_b": scale * jax.random.normal(keys[2], (vocab_size,), jnp.float32),
        "gru": [],
    }
    for l in range(num_layers):
        in_dim = embed_dim if l == 0 else hidden_dim
        k = keys[3 + 4 * l: 3 + 4 * (l + 1)]
        params["gru"].append({
            "w_ih": scale * jax.random.normal(k[0], (3 * hidden_dim, in_dim), jnp.float32),
            "w_hh": scale * jax.random.normal(k[1], (3 * hidden_dim, hidden_dim), jnp.float32),
            "b_ih": scale * jax.random.normal(k[2], (3 * hidden_dim,), jnp.float32),
            "b_hh": scale * jax.random.normal(k[3], (3 * hidden_dim,), jnp.float32),
        })
    return params


def _char_rnn_ref(params, x_tokens, num_layers, hidden_dim):
    H = hidden_dim
    emb = jnp.take(params["embed"], x_tokens, axis=0)        # (B, T, E)
    x_seq = jnp.transpose(emb, (1, 0, 2))                    # (T, B, E)
    T, B = x_seq.shape[0], x_seq.shape[1]
    layer_in, hiddens = x_seq, []
    for l in range(num_layers):
        p = params["gru"][l]
        h = jnp.zeros((B, H), jnp.float32)
        outs = []
        for t in range(T):
            gi = layer_in[t] @ p["w_ih"].T + p["b_ih"]
            gh = h @ p["w_hh"].T + p["b_hh"]
            r = jax.nn.sigmoid(gi[:, :H] + gh[:, :H])
            z = jax.nn.sigmoid(gi[:, H:2 * H] + gh[:, H:2 * H])
            n = jnp.tanh(gi[:, 2 * H:] + r * gh[:, 2 * H:])
            h = (1.0 - z) * n + z * h
            outs.append(h)
        layer_in = jnp.stack(outs, axis=0)
        hiddens.append(h)
    logits = layer_in[-1] @ params["fc_w"].T + params["fc_b"]
    return logits, jnp.stack(hiddens, axis=0)


if __name__ == "__main__":
    vocab_size, embed_dim, hidden_dim, num_layers = 64, 32, 32, 2
    batch, seq = 2, 8

    key = jax.random.PRNGKey(0)
    k_param, k_tok = jax.random.split(key)
    params = init_params(k_param, vocab_size, embed_dim, hidden_dim, num_layers)
    prepared = prepare_params(params, embed_dim, hidden_dim)     # one-time transpose+pad+stack
    x_tokens = jax.random.randint(k_tok, (batch, seq), 0, vocab_size, dtype=jnp.int32)

    logits, hidden = char_rnn_forward(prepared, x_tokens, num_layers,
                                      hidden_dim, vocab_size)
    jax.block_until_ready((logits, hidden))

    assert logits.shape == (batch, vocab_size)
    assert hidden.shape == (num_layers, batch, hidden_dim)

    ref_logits, ref_hidden = _char_rnn_ref(params, x_tokens, num_layers, hidden_dim)
    err_l = float(jnp.max(jnp.abs(logits - ref_logits)))
    err_h = float(jnp.max(jnp.abs(hidden - ref_hidden)))
    assert err_l < 1e-3 and err_h < 1e-3, (err_l, err_h)

    print("KERNEL_OK")
</pallas_src>

<mosaic_0001>
module attributes {stable_mosaic.version = 11 : i64} {
  func.func @kernel(%arg0: i32, %arg1: memref<64x128xf32, #tpu.memory_space<vmem>>, %arg2: memref<1x128x384xf32, #tpu.memory_space<vmem>>, %arg3: memref<1x128x384xf32, #tpu.memory_space<vmem>>, %arg4: memref<1x1x384xf32, #tpu.memory_space<vmem>>, %arg5: memref<1x1x384xf32, #tpu.memory_space<vmem>>, %arg6: memref<128x128xf32, #tpu.memory_space<vmem>>, %arg7: memref<1x128xf32, #tpu.memory_space<vmem>>, %arg8: memref<8x128xf32, #tpu.memory_space<vmem>>, %arg9: memref<1x8x128xf32, #tpu.memory_space<vmem>>, %arg10: memref<64x128xf32, #tpu.memory_space<vmem>>, %arg11: memref<64x384xf32, #tpu.memory_space<vmem>>) attributes {dimension_semantics = [#tpu.dimension_semantics<arbitrary>], iteration_bounds = array<i64: 2>, scalar_prefetch = 0 : i64, scratch_operands = 2 : i64, tpu.core_type = #tpu.core_type<tc>, window_params = [{pipeline_mode = #tpu.pipeline_mode<synchronous>, transform_indices = @transform_0, window_bounds = array<i64: 64, 128>}, {transform_indices = @transform_1, window_bounds = array<i64: 1, 128, 384>}, {transform_indices = @transform_2, window_bounds = array<i64: 1, 128, 384>}, {transform_indices = @transform_3, window_bounds = array<i64: 1, 1, 384>}, {transform_indices = @transform_4, window_bounds = array<i64: 1, 1, 384>}, {pipeline_mode = #tpu.pipeline_mode<synchronous>, transform_indices = @transform_5, window_bounds = array<i64: 128, 128>}, {pipeline_mode = #tpu.pipeline_mode<synchronous>, transform_indices = @transform_6, window_bounds = array<i64: 1, 128>}, {pipeline_mode = #tpu.pipeline_mode<synchronous>, transform_indices = @transform_7, window_bounds = array<i64: 8, 128>}, {transform_indices = @transform_8, window_bounds = array<i64: 1, 8, 128>}]} {
    %c0_i32 = arith.constant 0 : i32
    %0 = arith.cmpi eq, %arg0, %c0_i32 : i32
    %1 = arith.extui %0 : i1 to i32
    %c0_i32_0 = arith.constant 0 : i32
    %2 = arith.cmpi ne, %1, %c0_i32_0 : i32
    scf.if %2 {
      %c0_62 = arith.constant 0 : index
      %c0_63 = arith.constant 0 : index
      %201 = vector.load %arg1[%c0_62, %c0_63] : memref<64x128xf32, #tpu.memory_space<vmem>>, vector<64x128xf32>
      %c0_64 = arith.constant 0 : index
      %c0_65 = arith.constant 0 : index
      %202 = vector.load %arg10[%c0_64, %c0_65] : memref<64x128xf32, #tpu.memory_space<vmem>>, vector<64x128xf32>
      tpu.vector_store %arg10[%c0_64, %c0_65], %201 {strides = array<i32>} : memref<64x128xf32, #tpu.memory_space<vmem>>, vector<64x128xf32>,
    } else {
    }
    %c0 = arith.constant 0 : index
    %c0_1 = arith.constant 0 : index
    %3 = vector.load %arg10[%c0, %c0_1] : memref<64x128xf32, #tpu.memory_space<vmem>>, vector<64x128xf32>
    %c0_2 = arith.constant 0 : index
    %c0_3 = arith.constant 0 : index
    %c0_4 = arith.constant 0 : index
    %4 = vector.load %arg2[%c0_2, %c0_3, %c0_4] : memref<1x128x384xf32, #tpu.memory_space<vmem>>, vector<1x128x384xf32>
    %5 = vector.shape_cast %4 : vector<1x128x384xf32> to vector<128x384xf32>
    %cst = arith.constant dense<0.000000e+00> : vector<64x384xf32>
    %6 = tpu.matmul %3, %5, %cst {dimension_numbers = #tpu.dot_dimension_numbers<[1], [0], [0], [1], [0, 0, 1, 1], [], []>} : vector<64x128xf32>, vector<128x384xf32>, vector<64x384xf32> -> vector<64x384xf32>
    %c0_5 = arith.constant 0 : index
    %c0_6 = arith.constant 0 : index
    %c0_7 = arith.constant 0 : index
    %7 = vector.load %arg4[%c0_5, %c0_6, %c0_7] : memref<1x1x384xf32, #tpu.memory_space<vmem>>, vector<1x1x384xf32>
    %8 = vector.shape_cast %7 : vector<1x1x384xf32> to vector<1x384xf32>
    %9 = vector.broadcast %8 : vector<1x384xf32> to vector<64x384xf32>
    %10 = arith.addf %6, %9 : vector<64x384xf32>
    %c0_8 = arith.constant 0 : index
    %c0_9 = arith.constant 0 : index
    %11 = vector.load %arg11[%c0_8, %c0_9] : memref<64x384xf32, #tpu.memory_space<vmem>>, vector<64x384xf32>
    tpu.vector_store %arg11[%c0_8, %c0_9], %10 {strides = array<i32>} : memref<64x384xf32, #tpu.memory_space<vmem>>, vector<64x384xf32>,
    %c0_10 = arith.constant 0 : index
    %c0_11 = arith.constant 0 : index
    %c0_12 = arith.constant 0 : index
    %12 = vector.load %arg3[%c0_10, %c0_11, %c0_12] : memref<1x128x384xf32, #tpu.memory_space<vmem>>, vector<1x128x384xf32>
    %13 = vector.shape_cast %12 : vector<1x128x384xf32> to vector<128x384xf32>
    %c0_13 = arith.constant 0 : index
    %c0_14 = arith.constant 0 : index
    %c0_15 = arith.constant 0 : index
    %14 = vector.load %arg5[%c0_13, %c0_14, %c0_15] : memref<1x1x384xf32, #tpu.memory_space<vmem>>, vector<1x1x384xf32>
    %15 = vector.shape_cast %14 : vector<1x1x384xf32> to vector<1x384xf32>
    %16 = vector.shape_cast %15 : vector<1x384xf32> to vector<1x384xf32>
    %17 = vector.broadcast %16 : vector<1x384xf32> to vector<8x384xf32>
    %cst_16 = arith.constant 0.000000e+00 : f32
    %18 = vector.broadcast %cst_16 : f32 to vector<8x128xf32>
    %c0_17 = arith.constant 0 : index
    %c0_18 = arith.constant 0 : index
    %19 = vector.load %arg11[%c0_17, %c0_18] : memref<64x384xf32, #tpu.memory_space<vmem>>, vector<8x384xf32>
    %cst_19 = arith.constant dense<0.000000e+00> : vector<8x384xf32>
    %20 = tpu.matmul %18, %13, %cst_19 {dimension_numbers = #tpu.dot_dimension_numbers<[1], [0], [0], [1], [0, 0, 1, 1], [], []>} : vector<8x128xf32>, vector<128x384xf32>, vector<8x384xf32> -> vector<8x384xf32>
    %21 = arith.addf %20, %17 : vector<8x384xf32>
    %22 = vector.extract_strided_slice %19 {offsets = [0, 0], sizes = [8, 256], strides = [1, 1]} : vector<8x384xf32> to vector<8x256xf32>
    %23 = vector.extract_strided_slice %21 {offsets = [0, 0], sizes = [8, 256], strides = [1, 1]} : vector<8x384xf32> to vector<8x256xf32>
    %24 = arith.addf %22, %23 : vector<8x256xf32>
    %25 = arith.negf %24 : vector<8x256xf32>
    %26 = math.exp %25 : vector<8x256xf32>
    %cst_20 = arith.constant 1.000000e+00 : f32
    %27 = vector.broadcast %cst_20 : f32 to vector<8x256xf32>
    %28 = arith.addf %27, %26 : vector<8x256xf32>
    %29 = arith.divf %27, %28 : vector<8x256xf32>
    %30 = vector.extract_strided_slice %29 {offsets = [0, 0], sizes = [8, 128], strides = [1, 1]} : vector<8x256xf32> to vector<8x128xf32>
    %31 = vector.extract_strided_slice %29 {offsets = [0, 128], sizes = [8, 128], strides = [1, 1]} : vector<8x256xf32> to vector<8x128xf32>
    %32 = vector.extract_strided_slice %19 {offsets = [0, 256], sizes = [8, 128], strides = [1, 1]} : vector<8x384xf32> to vector<8x128xf32>
    %33 = vector.extract_strided_slice %21 {offsets = [0, 256], sizes = [8, 128], strides = [1, 1]} : vector<8x384xf32> to vector<8x128xf32>
    %34 = arith.mulf %30, %33 : vector<8x128xf32>
    %35 = arith.addf %32, %34 : vector<8x128xf32>
    %36 = math.tanh %35 : vector<8x128xf32>
    %37 = arith.subf %18, %36 : vector<8x128xf32>
    %38 = arith.mulf %31, %37 : vector<8x128xf32>
    %39 = arith.addf %36, %38 : vector<8x128xf32>
    %c0_21 = arith.constant 0 : index
    %c0_22 = arith.constant 0 : index
    %40 = vector.load %arg10[%c0_21, %c0_22] : memref<64x128xf32, #tpu.memory_space<vmem>>, vector<8x128xf32>
    tpu.vector_store %arg10[%c0_21, %c0_22], %39 {strides = array<i32>} : memref<64x128xf32, #tpu.memory_space<vmem>>, vector<8x128xf32>,
    %c8 = arith.constant 8 : index
    %c0_23 = arith.constant 0 : index
    %41 = vector.load %arg11[%c8, %c0_23] : memref<64x384xf32, #tpu.memory_space<vmem>>, vector<8x384xf32>
    %cst_24 = arith.constant dense<0.000000e+00> : vector<8x384xf32>
    %42 = tpu.matmul %39, %13, %cst_24 {dimension_numbers = #tpu.dot_dimension_numbers<[1], [0], [0], [1], [0, 0, 1, 1], [], []>} : vector<8x128xf32>, vector<128x384xf32>, vector<8x384xf32> -> vector<8x384xf32>
    %43 = arith.addf %42, %17 : vector<8x384xf32>
    %44 = vector.extract_strided_slice %41 {offsets = [0, 0], sizes = [8, 256], strides = [1, 1]} : vector<8x384xf32> to vector<8x256xf32>
    %45 = vector.extract_strided_slice %43 {offsets = [0, 0], sizes = [8, 256], strides = [1, 1]} : vector<8x384xf32> to vector<8x256xf32>
    %46 = arith.addf %44, %45 : vector<8x256xf32>
    %47 = arith.negf %46 : vector<8x256xf32>
    %48 = math.exp %47 : vector<8x256xf32>
    %cst_25 = arith.constant 1.000000e+00 : f32
    %49 = vector.broadcast %cst_25 : f32 to vector<8x256xf32>
    %50 = arith.addf %49, %48 : vector<8x256xf32>
    %51 = arith.divf %49, %50 : vector<8x256xf32>
    %52 = vector.extract_strided_slice %51 {offsets = [0, 0], sizes = [8, 128], strides = [1, 1]} : vector<8x256xf32> to vector<8x128xf32>
    %53 = vector.extract_strided_slice %51 {offsets = [0, 128], sizes = [8, 128], strides = [1, 1]} : vector<8x256xf32> to vector<8x128xf32>
    %54 = vector.extract_strided_slice %41 {offsets = [0, 256], sizes = [8, 128], strides = [1, 1]} : vector<8x384xf32> to vector<8x128xf32>
    %55 = vector.extract_strided_slice %43 {offsets = [0, 256], sizes = [8, 128], strides = [1, 1]} : vector<8x384xf32> to vector<8x128xf32>
    %56 = arith.mulf %52, %55 : vector<8x128xf32>
    %57 = arith.addf %54, %56 : vector<8x128xf32>
    %58 = math.tanh %57 : vector<8x128xf32>
    %59 = arith.subf %39, %58 : vector<8x128xf32>
    %60 = arith.mulf %53, %59 : vector<8x128xf32>
    %61 = arith.addf %58, %60 : vector<8x128xf32>
    %c8_26 = arith.constant 8 : index
    %c0_27 = arith.constant 0 : index
    %62 = vector.load %arg10[%c8_26, %c0_27] : memref<64x128xf32, #tpu.memory_space<vmem>>, vector<8x128xf32>
    tpu.vector_store %arg10[%c8_26, %c0_27], %61 {strides = array<i32>} : memref<64x128xf32, #tpu.memory_space<vmem>>, vector<8x128xf32>,
    %c16 = arith.constant 16 : index
    %c0_28 = arith.constant 0 : index
    %63 = vector.load %arg11[%c16, %c0_28] : memref<64x384xf32, #tpu.memory_space<vmem>>, vector<8x384xf32>
    %cst_29 = arith.constant dense<0.000000e+00> : vector<8x384xf32>
    %64 = tpu.matmul %61, %13, %cst_29 {dimension_numbers = #tpu.dot_dimension_numbers<[1], [0], [0], [1], [0, 0, 1, 1], [], []>} : vector<8x128xf32>, vector<128x384xf32>, vector<8x384xf32> -> vector<8x384xf32>
    %65 = arith.addf %64, %17 : vector<8x384xf32>
    %66 = vector.extract_strided_slice %63 {offsets = [0, 0], sizes = [8, 256], strides = [1, 1]} : vector<8x384xf32> to vector<8x256xf32>
    %67 = vector.extract_strided_slice %65 {offsets = [0, 0], sizes = [8, 256], strides = [1, 1]} : vector<8x384xf32> to vector<8x256xf32>
    %68 = arith.addf %66, %67 : vector<8x256xf32>
    %69 = arith.negf %68 : vector<8x256xf32>
    %70 = math.exp %69 : vector<8x256xf32>
    %cst_30 = arith.constant 1.000000e+00 : f32
    %71 = vector.broadcast %cst_30 : f32 to vector<8x256xf32>
    %72 = arith.addf %71, %70 : vector<8x256xf32>
    %73 = arith.divf %71, %72 : vector<8x256xf32>
    %74 = vector.extract_strided_slice %73 {offsets = [0, 0], sizes = [8, 128], strides = [1, 1]} : vector<8x256xf32> to vector<8x128xf32>
    %75 = vector.extract_strided_slice %73 {offsets = [0, 128], sizes = [8, 128], strides = [1, 1]} : vector<8x256xf32> to vector<8x128xf32>
    %76 = vector.extract_strided_slice %63 {offsets = [0, 256], sizes = [8, 128], strides = [1, 1]} : vector<8x384xf32> to vector<8x128xf32>
    %77 = vector.extract_strided_slice %65 {offsets = [0, 256], sizes = [8, 128], strides = [1, 1]} : vector<8x384xf32> to vector<8x128xf32>
    %78 = arith.mulf %74, %77 : vector<8x128xf32>
    %79 = arith.addf %76, %78 : vector<8x128xf32>
    %80 = math.tanh %79 : vector<8x128xf32>
    %81 = arith.subf %61, %80 : vector<8x128xf32>
    %82 = arith.mulf %75, %81 : vector<8x128xf32>
    %83 = arith.addf %80, %82 : vector<8x128xf32>
    %c16_31 = arith.constant 16 : index
    %c0_32 = arith.constant 0 : index
    %84 = vector.load %arg10[%c16_31, %c0_32] : memref<64x128xf32, #tpu.memory_space<vmem>>, vector<8x128xf32>
    tpu.vector_store %arg10[%c16_31, %c0_32], %83 {strides = array<i32>} : memref<64x128xf32, #tpu.memory_space<vmem>>, vector<8x128xf32>,
    %c24 = arith.constant 24 : index
    %c0_33 = arith.constant 0 : index
    %85 = vector.load %arg11[%c24, %c0_33] : memref<64x384xf32, #tpu.memory_space<vmem>>, vector<8x384xf32>
    %cst_34 = arith.constant dense<0.000000e+00> : vector<8x384xf32>
    %86 = tpu.matmul %83, %13, %cst_34 {dimension_numbers = #tpu.dot_dimension_numbers<[1], [0], [0], [1], [0, 0, 1, 1], [], []>} : vector<8x128xf32>, vector<128x384xf32>, vector<8x384xf32> -> vector<8x384xf32>
    %87 = arith.addf %86, %17 : vector<8x384xf32>
    %88 = vector.extract_strided_slice %85 {offsets = [0, 0], sizes = [8, 256], strides = [1, 1]} : vector<8x384xf32> to vector<8x256xf32>
    %89 = vector.extract_strided_slice %87 {offsets = [0, 0], sizes = [8, 256], strides = [1, 1]} : vector<8x384xf32> to vector<8x256xf32>
    %90 = arith.addf %88, %89 : vector<8x256xf32>
    %91 = arith.negf %90 : vector<8x256xf32>
    %92 = math.exp %91 : vector<8x256xf32>
    %cst_35 = arith.constant 1.000000e+00 : f32
    %93 = vector.broadcast %cst_35 : f32 to vector<8x256xf32>
    %94 = arith.addf %93, %92 : vector<8x256xf32>
    %95 = arith.divf %93, %94 : vector<8x256xf32>
    %96 = vector.extract_strided_slice %95 {offsets = [0, 0], sizes = [8, 128], strides = [1, 1]} : vector<8x256xf32> to vector<8x128xf32>
    %97 = vector.extract_strided_slice %95 {offsets = [0, 128], sizes = [8, 128], strides = [1, 1]} : vector<8x256xf32> to vector<8x128xf32>
    %98 = vector.extract_strided_slice %85 {offsets = [0, 256], sizes = [8, 128], strides = [1, 1]} : vector<8x384xf32> to vector<8x128xf32>
    %99 = vector.extract_strided_slice %87 {offsets = [0, 256], sizes = [8, 128], strides = [1, 1]} : vector<8x384xf32> to vector<8x128xf32>
    %100 = arith.mulf %96, %99 : vector<8x128xf32>
    %101 = arith.addf %98, %100 : vector<8x128xf32>
    %102 = math.tanh %101 : vector<8x128xf32>
    %103 = arith.subf %83, %102 : vector<8x128xf32>
    %104 = arith.mulf %97, %103 : vector<8x128xf32>
    %105 = arith.addf %102, %104 : vector<8x128xf32>
    %c24_36 = arith.constant 24 : index
    %c0_37 = arith.constant 0 : index
    %106 = vector.load %arg10[%c24_36, %c0_37] : memref<64x128xf32, #tpu.memory_space<vmem>>, vector<8x128xf32>
    tpu.vector_store %arg10[%c24_36, %c0_37], %105 {strides = array<i32>} : memref<64x128xf32, #tpu.memory_space<vmem>>, vector<8x128xf32>,
    %c32 = arith.constant 32 : index
    %c0_38 = arith.constant 0 : index
    %107 = vector.load %arg11[%c32, %c0_38] : memref<64x384xf32, #tpu.memory_space<vmem>>, vector<8x384xf32>
    %cst_39 = arith.constant dense<0.000000e+00> : vector<8x384xf32>
    %108 = tpu.matmul %105, %13, %cst_39 {dimension_numbers = #tpu.dot_dimension_numbers<[1], [0], [0], [1], [0, 0, 1, 1], [], []>} : vector<8x128xf32>, vector<128x384xf32>, vector<8x384xf32> -> vector<8x384xf32>
    %109 = arith.addf %108, %17 : vector<8x384xf32>
    %110 = vector.extract_strided_slice %107 {offsets = [0, 0], sizes = [8, 256], strides = [1, 1]} : vector<8x384xf32> to vector<8x256xf32>
    %111 = vector.extract_strided_slice %109 {offsets = [0, 0], sizes = [8, 256], strides = [1, 1]} : vector<8x384xf32> to vector<8x256xf32>
    %112 = arith.addf %110, %111 : vector<8x256xf32>
    %113 = arith.negf %112 : vector<8x256xf32>
    %114 = math.exp %113 : vector<8x256xf32>
    %cst_40 = arith.constant 1.000000e+00 : f32
    %115 = vector.broadcast %cst_40 : f32 to vector<8x256xf32>
    %116 = arith.addf %115, %114 : vector<8x256xf32>
    %117 = arith.divf %115, %116 : vector<8x256xf32>
    %118 = vector.extract_strided_slice %117 {offsets = [0, 0], sizes = [8, 128], strides = [1, 1]} : vector<8x256xf32> to vector<8x128xf32>
    %119 = vector.extract_strided_slice %117 {offsets = [0, 128], sizes = [8, 128], strides = [1, 1]} : vector<8x256xf32> to vector<8x128xf32>
    %120 = vector.extract_strided_slice %107 {offsets = [0, 256], sizes = [8, 128], strides = [1, 1]} : vector<8x384xf32> to vector<8x128xf32>
    %121 = vector.extract_strided_slice %109 {offsets = [0, 256], sizes = [8, 128], strides = [1, 1]} : vector<8x384xf32> to vector<8x128xf32>
    %122 = arith.mulf %118, %121 : vector<8x128xf32>
    %123 = arith.addf %120, %122 : vector<8x128xf32>
    %124 = math.tanh %123 : vector<8x128xf32>
    %125 = arith.subf %105, %124 : vector<8x128xf32>
    %126 = arith.mulf %119, %125 : vector<8x128xf32>
    %127 = arith.addf %124, %126 : vector<8x128xf32>
    %c32_41 = arith.constant 32 : index
    %c0_42 = arith.constant 0 : index
    %128 = vector.load %arg10[%c32_41, %c0_42] : memref<64x128xf32, #tpu.memory_space<vmem>>, vector<8x128xf32>
    tpu.vector_store %arg10[%c32_41, %c0_42], %127 {strides = array<i32>} : memref<64x128xf32, #tpu.memory_space<vmem>>, vector<8x128xf32>,
    %c40 = arith.constant 40 : index
    %c0_43 = arith.constant 0 : index
    %129 = vector.load %arg11[%c40, %c0_43] : memref<64x384xf32, #tpu.memory_space<vmem>>, vector<8x384xf32>
    %cst_44 = arith.constant dense<0.000000e+00> : vector<8x384xf32>
    %130 = tpu.matmul %127, %13, %cst_44 {dimension_numbers = #tpu.dot_dimension_numbers<[1], [0], [0], [1], [0, 0, 1, 1], [], []>} : vector<8x128xf32>, vector<128x384xf32>, vector<8x384xf32> -> vector<8x384xf32>
    %131 = arith.addf %130, %17 : vector<8x384xf32>
    %132 = vector.extract_strided_slice %129 {offsets = [0, 0], sizes = [8, 256], strides = [1, 1]} : vector<8x384xf32> to vector<8x256xf32>
    %133 = vector.extract_strided_slice %131 {offsets = [0, 0], sizes = [8, 256], strides = [1, 1]} : vector<8x384xf32> to vector<8x256xf32>
    %134 = arith.addf %132, %133 : vector<8x256xf32>
    %135 = arith.negf %134 : vector<8x256xf32>
    %136 = math.exp %135 : vector<8x256xf32>
    %cst_45 = arith.constant 1.000000e+00 : f32
    %137 = vector.broadcast %cst_45 : f32 to vector<8x256xf32>
    %138 = arith.addf %137, %136 : vector<8x256xf32>
    %139 = arith.divf %137, %138 : vector<8x256xf32>
    %140 = vector.extract_strided_slice %139 {offsets = [0, 0], sizes = [8, 128], strides = [1, 1]} : vector<8x256xf32> to vector<8x128xf32>
    %141 = vector.extract_strided_slice %139 {offsets = [0, 128], sizes = [8, 128], strides = [1, 1]} : vector<8x256xf32> to vector<8x128xf32>
    %142 = vector.extract_strided_slice %129 {offsets = [0, 256], sizes = [8, 128], strides = [1, 1]} : vector<8x384xf32> to vector<8x128xf32>
    %143 = vector.extract_strided_slice %131 {offsets = [0, 256], sizes = [8, 128], strides = [1, 1]} : vector<8x384xf32> to vector<8x128xf32>
    %144 = arith.mulf %140, %143 : vector<8x128xf32>
    %145 = arith.addf %142, %144 : vector<8x128xf32>
    %146 = math.tanh %145 : vector<8x128xf32>
    %147 = arith.subf %127, %146 : vector<8x128xf32>
    %148 = arith.mulf %141, %147 : vector<8x128xf32>
    %149 = arith.addf %146, %148 : vector<8x128xf32>
    %c40_46 = arith.constant 40 : index
    %c0_47 = arith.constant 0 : index
    %150 = vector.load %arg10[%c40_46, %c0_47] : memref<64x128xf32, #tpu.memory_space<vmem>>, vector<8x128xf32>
    tpu.vector_store %arg10[%c40_46, %c0_47], %149 {strides = array<i32>} : memref<64x128xf32, #tpu.memory_space<vmem>>, vector<8x128xf32>,
    %c48 = arith.constant 48 : index
    %c0_48 = arith.constant 0 : index
    %151 = vector.load %arg11[%c48, %c0_48] : memref<64x384xf32, #tpu.memory_space<vmem>>, vector<8x384xf32>
    %cst_49 = arith.constant dense<0.000000e+00> : vector<8x384xf32>
    %152 = tpu.matmul %149, %13, %cst_49 {dimension_numbers = #tpu.dot_dimension_numbers<[1], [0], [0], [1], [0, 0, 1, 1], [], []>} : vector<8x128xf32>, vector<128x384xf32>, vector<8x384xf32> -> vector<8x384xf32>
    %153 = arith.addf %152, %17 : vector<8x384xf32>
    %154 = vector.extract_strided_slice %151 {offsets = [0, 0], sizes = [8, 256], strides = [1, 1]} : vector<8x384xf32> to vector<8x256xf32>
    %155 = vector.extract_strided_slice %153 {offsets = [0, 0], sizes = [8, 256], strides = [1, 1]} : vector<8x384xf32> to vector<8x256xf32>
    %156 = arith.addf %154, %155 : vector<8x256xf32>
    %157 = arith.negf %156 : vector<8x256xf32>
    %158 = math.exp %157 : vector<8x256xf32>
    %cst_50 = arith.constant 1.000000e+00 : f32
    %159 = vector.broadcast %cst_50 : f32 to vector<8x256xf32>
    %160 = arith.addf %159, %158 : vector<8x256xf32>
    %161 = arith.divf %159, %160 : vector<8x256xf32>
    %162 = vector.extract_strided_slice %161 {offsets = [0, 0], sizes = [8, 128], strides = [1, 1]} : vector<8x256xf32> to vector<8x128xf32>
    %163 = vector.extract_strided_slice %161 {offsets = [0, 128], sizes = [8, 128], strides = [1, 1]} : vector<8x256xf32> to vector<8x128xf32>
    %164 = vector.extract_strided_slice %151 {offsets = [0, 256], sizes = [8, 128], strides = [1, 1]} : vector<8x384xf32> to vector<8x128xf32>
    %165 = vector.extract_strided_slice %153 {offsets = [0, 256], sizes = [8, 128], strides = [1, 1]} : vector<8x384xf32> to vector<8x128xf32>
    %166 = arith.mulf %162, %165 : vector<8x128xf32>
    %167 = arith.addf %164, %166 : vector<8x128xf32>
    %168 = math.tanh %167 : vector<8x128xf32>
    %169 = arith.subf %149, %168 : vector<8x128xf32>
    %170 = arith.mulf %163, %169 : vector<8x128xf32>
    %171 = arith.addf %168, %170 : vector<8x128xf32>
    %c48_51 = arith.constant 48 : index
    %c0_52 = arith.constant 0 : index
    %172 = vector.load %arg10[%c48_51, %c0_52] : memref<64x128xf32, #tpu.memory_space<vmem>>, vector<8x128xf32>
    tpu.vector_store %arg10[%c48_51, %c0_52], %171 {strides = array<i32>} : memref<64x128xf32, #tpu.memory_space<vmem>>, vector<8x128xf32>,
    %c56 = arith.constant 56 : index
    %c0_53 = arith.constant 0 : index
    %173 = vector.load %arg11[%c56, %c0_53] : memref<64x384xf32, #tpu.memory_space<vmem>>, vector<8x384xf32>
    %cst_54 = arith.constant dense<0.000000e+00> : vector<8x384xf32>
    %174 = tpu.matmul %171, %13, %cst_54 {dimension_numbers = #tpu.dot_dimension_numbers<[1], [0], [0], [1], [0, 0, 1, 1], [], []>} : vector<8x128xf32>, vector<128x384xf32>, vector<8x384xf32> -> vector<8x384xf32>
    %175 = arith.addf %174, %17 : vector<8x384xf32>
    %176 = vector.extract_strided_slice %173 {offsets = [0, 0], sizes = [8, 256], strides = [1, 1]} : vector<8x384xf32> to vector<8x256xf32>
    %177 = vector.extract_strided_slice %175 {offsets = [0, 0], sizes = [8, 256], strides = [1, 1]} : vector<8x384xf32> to vector<8x256xf32>
    %178 = arith.addf %176, %177 : vector<8x256xf32>
    %179 = arith.negf %178 : vector<8x256xf32>
    %180 = math.exp %179 : vector<8x256xf32>
    %cst_55 = arith.constant 1.000000e+00 : f32
    %181 = vector.broadcast %cst_55 : f32 to vector<8x256xf32>
    %182 = arith.addf %181, %180 : vector<8x256xf32>
    %183 = arith.divf %181, %182 : vector<8x256xf32>
    %184 = vector.extract_strided_slice %183 {offsets = [0, 0], sizes = [8, 128], strides = [1, 1]} : vector<8x256xf32> to vector<8x128xf32>
    %185 = vector.extract_strided_slice %183 {offsets = [0, 128], sizes = [8, 128], strides = [1, 1]} : vector<8x256xf32> to vector<8x128xf32>
    %186 = vector.extract_strided_slice %173 {offsets = [0, 256], sizes = [8, 128], strides = [1, 1]} : vector<8x384xf32> to vector<8x128xf32>
    %187 = vector.extract_strided_slice %175 {offsets = [0, 256], sizes = [8, 128], strides = [1, 1]} : vector<8x384xf32> to vector<8x128xf32>
    %188 = arith.mulf %184, %187 : vector<8x128xf32>
    %189 = arith.addf %186, %188 : vector<8x128xf32>
    %190 = math.tanh %189 : vector<8x128xf32>
    %191 = arith.subf %171, %190 : vector<8x128xf32>
    %192 = arith.mulf %185, %191 : vector<8x128xf32>
    %193 = arith.addf %190, %192 : vector<8x128xf32>
    %c56_56 = arith.constant 56 : index
    %c0_57 = arith.constant 0 : index
    %194 = vector.load %arg10[%c56_56, %c0_57] : memref<64x128xf32, #tpu.memory_space<vmem>>, vector<8x128xf32>
    tpu.vector_store %arg10[%c56_56, %c0_57], %193 {strides = array<i32>} : memref<64x128xf32, #tpu.memory_space<vmem>>, vector<8x128xf32>,
    %c0_58 = arith.constant 0 : index
    %c0_59 = arith.constant 0 : index
    %c0_60 = arith.constant 0 : index
    %195 = vector.load %arg9[%c0_58, %c0_59, %c0_60] : memref<1x8x128xf32, #tpu.memory_space<vmem>>, vector<1x8x128xf32>
    %196 = vector.shape_cast %195 : vector<1x8x128xf32> to vector<8x128xf32>
    %197 = vector.shape_cast %193 : vector<8x128xf32> to vector<1x8x128xf32>
    tpu.vector_store %arg9[%c0_58, %c0_59, %c0_60], %197 {strides = array<i32>} : memref<1x8x128xf32, #tpu.memory_space<vmem>>, vector<1x8x128xf32>,
    %c1_i32 = arith.constant 1 : i32
    %198 = arith.cmpi eq, %arg0, %c1_i32 : i32
    %199 = arith.extui %198 : i1 to i32
    %c0_i32_61 = arith.constant 0 : i32
    %200 = arith.cmpi ne, %199, %c0_i32_61 : i32
    scf.if %200 {
      %c0_62 = arith.constant 0 : index
      %c0_63 = arith.constant 0 : index
      %201 = vector.load %arg6[%c0_62, %c0_63] : memref<128x128xf32, #tpu.memory_space<vmem>>, vector<128x128xf32>
      %cst_64 = arith.constant dense<0.000000e+00> : vector<8x128xf32>
      %202 = tpu.matmul %193, %201, %cst_64 {dimension_numbers = #tpu.dot_dimension_numbers<[1], [0], [0], [1], [0, 0, 1, 1], [], []>} : vector<8x128xf32>, vector<128x128xf32>, vector<8x128xf32> -> vector<8x128xf32>
      %c0_65 = arith.constant 0 : index
      %c0_66 = arith.constant 0 : index
      %203 = vector.load %arg7[%c0_65, %c0_66] : memref<1x128xf32, #tpu.memory_space<vmem>>, vector<1x128xf32>
      %204 = vector.broadcast %203 : vector<1x128xf32> to vector<8x128xf32>
      %205 = arith.addf %202, %204 : vector<8x128xf32>
      %c0_67 = arith.constant 0 : index
      %c0_68 = arith.constant 0 : index
      %206 = vector.load %arg8[%c0_67, %c0_68] : memref<8x128xf32, #tpu.memory_space<vmem>>, vector<8x128xf32>
      tpu.vector_store %arg8[%c0_67, %c0_68], %205 {strides = array<i32>} : memref<8x128xf32, #tpu.memory_space<vmem>>, vector<8x128xf32>,
    } else {
    }
    return
  }
  func.func @transform_0(%arg0: i32) -> (i32, i32) {
    %c0_i32 = arith.constant 0 : i32
    %c0_i32_0 = arith.constant 0 : i32
    %c0_i32_1 = arith.constant 0 : i32
    return %c0_i32, %c0_i32_0 : i32, i32
  }
  func.func @transform_1(%arg0: i32) -> (i32, i32, i32) {
    %c0_i32 = arith.constant 0 : i32
    %c0_i32_0 = arith.constant 0 : i32
    %c0_i32_1 = arith.constant 0 : i32
    return %arg0, %c0_i32, %c0_i32_0 : i32, i32, i32
  }
  func.func @transform_2(%arg0: i32) -> (i32, i32, i32) {
    %c0_i32 = arith.constant 0 : i32
    %c0_i32_0 = arith.constant 0 : i32
    %c0_i32_1 = arith.constant 0 : i32
    return %arg0, %c0_i32, %c0_i32_0 : i32, i32, i32
  }
  func.func @transform_3(%arg0: i32) -> (i32, i32, i32) {
    %c0_i32 = arith.constant 0 : i32
    %c0_i32_0 = arith.constant 0 : i32
    %c0_i32_1 = arith.constant 0 : i32
    return %arg0, %c0_i32, %c0_i32_0 : i32, i32, i32
  }
  func.func @transform_4(%arg0: i32) -> (i32, i32, i32) {
    %c0_i32 = arith.constant 0 : i32
    %c0_i32_0 = arith.constant 0 : i32
    %c0_i32_1 = arith.constant 0 : i32
    return %arg0, %c0_i32, %c0_i32_0 : i32, i32, i32
  }
  func.func @transform_5(%arg0: i32) -> (i32, i32) {
    %c0_i32 = arith.constant 0 : i32
    %c0_i32_0 = arith.constant 0 : i32
    %c0_i32_1 = arith.constant 0 : i32
    return %c0_i32, %c0_i32_0 : i32, i32
  }
  func.func @transform_6(%arg0: i32) -> (i32, i32) {
    %c0_i32 = arith.constant 0 : i32
    %c0_i32_0 = arith.constant 0 : i32
    %c0_i32_1 = arith.constant 0 : i32
    return %c0_i32, %c0_i32_0 : i32, i32
  }
  func.func @transform_7(%arg0: i32) -> (i32, i32) {
    %c0_i32 = arith.constant 0 : i32
    %c0_i32_0 = arith.constant 0 : i32
    %c0_i32_1 = arith.constant 0 : i32
    return %c0_i32, %c0_i32_0 : i32, i32
  }
  func.func @transform_8(%arg0: i32) -> (i32, i32, i32) {
    %c0_i32 = arith.constant 0 : i32
    %c0_i32_0 = arith.constant 0 : i32
    %c0_i32_1 = arith.constant 0 : i32
    return %arg0, %c0_i32, %c0_i32_0 : i32, i32, i32
  }
}

</mosaic_0001>

<llo_original>
// kernel: char_rnn_forward.1
$region0: #{char_rnn_forward.1}
  #allocation0 [shape = 'u32[]', space=smem, size = 0x4, offset = 0x4, fixed_abs, tag = 'smem constant byte address 0x4 - core index']
  #allocation1 [shape = 'u32[144,128]{1,0:T(1,128)}', space=vmem, size = 0x12000, scoped, tag = 'internal scratch']
  #allocation2 [shape = 'f32[64,128]{1,0:T(8,128)}', space=vmem, size = 0x8000, scoped, tag = 'scratch operand']
  #allocation3 [shape = 'f32[64,384]{1,0:T(8,128)}', space=vmem, size = 0x18000, scoped, tag = 'scratch operand']
  %s0 = inlined_call_operand.vmem [shape: f32[64,128], index: 0, kind: input, shape index: {}]
  %s1 = inlined_call_operand.hbm [shape: f32[2,128,384], index: 1, kind: input, shape index: {}]
  %s2 = inlined_call_operand.hbm [shape: f32[2,128,384], index: 2, kind: input, shape index: {}]
  %s3 = inlined_call_operand.vmem [shape: f32[2,1,384], index: 3, kind: input, shape index: {}]
  %s4 = inlined_call_operand.vmem [shape: f32[2,1,384], index: 4, kind: input, shape index: {}]
  %s5 = inlined_call_operand.vmem [shape: f32[128,128], index: 5, kind: input, shape index: {}]
  %s6 = inlined_call_operand.vmem [shape: f32[1,128], index: 6, kind: input, shape index: {}]
  %s7 = inlined_call_operand.vmem [shape: f32[8,128], index: 7, kind: output, shape index: {0}]
  %s8 = inlined_call_operand.vmem [shape: f32[2,8,128], index: 8, kind: output, shape index: {1}]
  %9 = xla_tuple %s7, %s8
  %s10 = sld [smem:[#allocation0]]
  $region85: #{char_rnn_forward.1} parent=0
    _
  %s12 = ssub.s32 1, %s10
  %s13 = scalar_select 0, %s12, %s10
  $region1: #{char_rnn_forward.1} parent=0
    #allocation4 [shape = 'u8[393216]{0}', space=vmem, size = 0x60000, scoped, tag = 'input window, operand 1']
    #allocation5 [shape = 's32[2]{0}', space=sflag, size = 0x8, scoped, tag = 'scoped memory for char_rnn_forward.1']
    #allocation6 [shape = 'u8[393216]{0}', space=vmem, size = 0x60000, scoped, tag = 'input window, operand 2']
    #allocation7 [shape = 's32[2]{0}', space=sflag, size = 0x8, scoped, tag = 'scoped memory for char_rnn_forward.1']
    %14 = vsyncpa [#allocation5], 0
    %s15 = scalar_lea.sflag [#allocation5], 1
    %16 = vsyncpa %s15, 0
    %17 = vsyncpa [#allocation7], 0
    %s18 = scalar_lea.sflag [#allocation7], 1
    %19 = vsyncpa %s18, 0
    loop: start=0, step=1, limit=4
    $region2: #{char_rnn_forward.1} parent=1 // loop_pre_header
      _
    $region3: #{char_rnn_forward.1} parent=1 // loop_header
      %s21 = sphi 0, %s25
      %p22 = scmp.ge.s32.totalorder %s21, 4
      %s29 = sphi 0, %s29
      %s31 = sphi 0, %s29
      %s32 = sphi 0, %s31
      %s46 = sphi 0, %s32
      %s52 = sphi 0, %s54
      %s55 = sphi 0, %s52
      %s56 = sphi 0, %s55
      %s72 = sphi 0, %s56
      %s78 = sphi 0, %s80
      %s81 = sphi 0, %s78
      %s82 = sphi 0, %s81
      %s98 = sphi 0, %s82
      %s104 = sphi 0, %s106
      %s107 = sphi 0, %s104
      %s108 = sphi 0, %s107
      %s124 = sphi 0, %s108
      %s130 = sphi 0, %s132
      %s133 = sphi 0, %s130
      %s134 = sphi 0, %s133
      %s150 = sphi 0, %s134
      %s154 = sphi 0, %s154
      %s156 = sphi 0, %s154
      %s157 = sphi 0, %s156
      %s171 = sphi 0, %s157
      %s175 = sphi 0, %s175
      %s177 = sphi 0, %s175
      %s178 = sphi 0, %s177
      %s192 = sphi 0, %s178
      %s196 = sphi 0, %s196
      %s198 = sphi 0, %s196
      %s199 = sphi 0, %s198
      %s213 = sphi 0, %s199
      %s219 = sphi 0, %s221
      %s222 = sphi 0, %s219
      %s223 = sphi 0, %s222
      %s239 = sphi 0, %s223
    $region4: #{char_rnn_forward.1} parent=1 // loop_header_branch
      %24 = sbr.rel (%p22) target = $region8
    $region5: #{char_rnn_forward.1} parent=1 // loop_body
      %s26 = ssub.s32 %s21, 1
      %s27 = ssub.s32 %s21, 2
      %s28 = sadd.s32 %s21, 1
      %s30 = sadd.s32 %s29, 1
      %p33 = scmp.eq.s32.totalorder %s21, 1
      %p34 = scmp.ne.s32.totalorder %s29, %s31
      %p35 = scmp.eq.s32.totalorder %s21, 0
      %p36 = por %p34, %p35
      %p37 = scmp.ne.s32.totalorder %s29, %s31
      %p38 = scmp.eq.s32.totalorder %s26, 1
      %p39 = por %p37, %p38
      %p40 = scmp.ne.s32.totalorder %s31, %s32
      %p41 = scmp.eq.s32.totalorder %s26, 0
      %p42 = por %p40, %p41
      %p43 = scmp.ne.s32.totalorder %s31, %s32
      %p44 = scmp.eq.s32.totalorder %s27, 1
      %p45 = por %p43, %p44
      %p47 = scmp.ne.s32.totalorder %s32, %s46
      %p48 = scmp.eq.s32.totalorder %s27, 0
      %p49 = por %p47, %p48
      %s50 = ssub.s32 %s21, %s28
      %p51 = scmp.eq.s32.totalorder %s50, 0
      %s53 = sadd.s32 %s52, 1
      %s54 = scalar_select %p51, %s52, %s53
      %p57 = pneg %p51
      %p58 = scmp.eq.s32.totalorder %s21, 1
      %p59 = por %p57, %p58
      %p60 = scmp.ne.s32.totalorder %s52, %s55
      %p61 = scmp.eq.s32.totalorder %s21, 0
      %p62 = por %p60, %p61
      %p63 = scmp.ne.s32.totalorder %s52, %s55
      %p64 = scmp.eq.s32.totalorder %s26, 1
      %p65 = por %p63, %p64
      %p66 = scmp.ne.s32.totalorder %s55, %s56
      %p67 = scmp.eq.s32.totalorder %s26, 0
      %p68 = por %p66, %p67
      %p69 = scmp.ne.s32.totalorder %s55, %s56
      %p70 = scmp.eq.s32.totalorder %s27, 1
      %p71 = por %p69, %p70
      %p73 = scmp.ne.s32.totalorder %s56, %s72
      %p74 = scmp.eq.s32.totalorder %s27, 0
      %p75 = por %p73, %p74
      %s76 = ssub.s32 %s21, %s28
      %p77 = scmp.eq.s32.totalorder %s76, 0
      %s79 = sadd.s32 %s78, 1
      %s80 = scalar_select %p77, %s78, %s79
      %p83 = pneg %p77
      %p84 = scmp.eq.s32.totalorder %s21, 1
      %p85 = por %p83, %p84
      %p86 = scmp.ne.s32.totalorder %s78, %s81
      %p87 = scmp.eq.s32.totalorder %s21, 0
      %p88 = por %p86, %p87
      %p89 = scmp.ne.s32.totalorder %s78, %s81
      %p90 = scmp.eq.s32.totalorder %s26, 1
      %p91 = por %p89, %p90
      %p92 = scmp.ne.s32.totalorder %s81, %s82
      %p93 = scmp.eq.s32.totalorder %s26, 0
      %p94 = por %p92, %p93
      %p95 = scmp.ne.s32.totalorder %s81, %s82
      %p96 = scmp.eq.s32.totalorder %s27, 1
      %p97 = por %p95, %p96
      %p99 = scmp.ne.s32.totalorder %s82, %s98
      %p100 = scmp.eq.s32.totalorder %s27, 0
      %p101 = por %p99, %p100
      %s102 = ssub.s32 %s21, %s28
      %p103 = scmp.eq.s32.totalorder %s102, 0
      %s105 = sadd.s32 %s104, 1
      %s106 = scalar_select %p103, %s104, %s105
      %p109 = pneg %p103
      %p110 = scmp.eq.s32.totalorder %s21, 1
      %p111 = por %p109, %p110
      %p112 = scmp.ne.s32.totalorder %s104, %s107
      %p113 = scmp.eq.s32.totalorder %s21, 0
      %p114 = por %p112, %p113
      %p115 = scmp.ne.s32.totalorder %s104, %s107
      %p116 = scmp.eq.s32.totalorder %s26, 1
      %p117 = por %p115, %p116
      %p118 = scmp.ne.s32.totalorder %s107, %s108
      %p119 = scmp.eq.s32.totalorder %s26, 0
      %p120 = por %p118, %p119
      %p121 = scmp.ne.s32.totalorder %s107, %s108
      %p122 = scmp.eq.s32.totalorder %s27, 1
      %p123 = por %p121, %p122
      %p125 = scmp.ne.s32.totalorder %s108, %s124
      %p126 = scmp.eq.s32.totalorder %s27, 0
      %p127 = por %p125, %p126
      %s128 = ssub.s32 %s21, %s28
      %p129 = scmp.eq.s32.totalorder %s128, 0
      %s131 = sadd.s32 %s130, 1
      %s132 = scalar_select %p129, %s130, %s131
      %p135 = pneg %p129
      %p136 = scmp.eq.s32.totalorder %s21, 1
      %p137 = por %p135, %p136
      %p138 = scmp.ne.s32.totalorder %s130, %s133
      %p139 = scmp.eq.s32.totalorder %s21, 0
      %p140 = por %p138, %p139
      %p141 = scmp.ne.s32.totalorder %s130, %s133
      %p142 = scmp.eq.s32.totalorder %s26, 1
      %p143 = por %p141, %p142
      %p144 = scmp.ne.s32.totalorder %s133, %s134
      %p145 = scmp.eq.s32.totalorder %s26, 0
      %p146 = por %p144, %p145
      %p147 = scmp.ne.s32.totalorder %s133, %s134
      %p148 = scmp.eq.s32.totalorder %s27, 1
      %p149 = por %p147, %p148
      %p151 = scmp.ne.s32.totalorder %s134, %s150
      %p152 = scmp.eq.s32.totalorder %s27, 0
      %p153 = por %p151, %p152
      %s155 = sadd.s32 %s154, 1
      %p158 = scmp.eq.s32.totalorder %s21, 1
      %p159 = scmp.ne.s32.totalorder %s154, %s156
      %p160 = scmp.eq.s32.totalorder %s21, 0
      %p161 = por %p159, %p160
      %p162 = scmp.ne.s32.totalorder %s154, %s156
      %p163 = scmp.eq.s32.totalorder %s26, 1
      %p164 = por %p162, %p163
      %p165 = scmp.ne.s32.totalorder %s156, %s157
      %p166 = scmp.eq.s32.totalorder %s26, 0
      %p167 = por %p165, %p166
      %p168 = scmp.ne.s32.totalorder %s156, %s157
      %p169 = scmp.eq.s32.totalorder %s27, 1
      %p170 = por %p168, %p169
      %p172 = scmp.ne.s32.totalorder %s157, %s171
      %p173 = scmp.eq.s32.totalorder %s27, 0
      %p174 = por %p172, %p173
      %s176 = sadd.s32 %s175, 1
      %p179 = scmp.eq.s32.totalorder %s21, 1
      %p180 = scmp.ne.s32.totalorder %s175, %s177
      %p181 = scmp.eq.s32.totalorder %s21, 0
      %p182 = por %p180, %p181
      %p183 = scmp.ne.s32.totalorder %s175, %s177
      %p184 = scmp.eq.s32.totalorder %s26, 1
      %p185 = por %p183, %p184
      %p186 = scmp.ne.s32.totalorder %s177, %s178
      %p187 = scmp.eq.s32.totalorder %s26, 0
      %p188 = por %p186, %p187
      %p189 = scmp.ne.s32.totalorder %s177, %s178
      %p190 = scmp.eq.s32.totalorder %s27, 1
      %p191 = por %p189, %p190
      %p193 = scmp.ne.s32.totalorder %s178, %s192
      %p194 = scmp.eq.s32.totalorder %s27, 0
      %p195 = por %p193, %p194
      %s197 = sadd.s32 %s196, 1
      %p200 = scmp.eq.s32.totalorder %s21, 1
      %p201 = scmp.ne.s32.totalorder %s196, %s198
      %p202 = scmp.eq.s32.totalorder %s21, 0
      %p203 = por %p201, %p202
      %p204 = scmp.ne.s32.totalorder %s196, %s198
      %p205 = scmp.eq.s32.totalorder %s26, 1
      %p206 = por %p204, %p205
      %p207 = scmp.ne.s32.totalorder %s198, %s199
      %p208 = scmp.eq.s32.totalorder %s26, 0
      %p209 = por %p207, %p208
      %p210 = scmp.ne.s32.totalorder %s198, %s199
      %p211 = scmp.eq.s32.totalorder %s27, 1
      %p212 = por %p210, %p211
      %p214 = scmp.ne.s32.totalorder %s199, %s213
      %p215 = scmp.eq.s32.totalorder %s27, 0
      %p216 = por %p214, %p215
      %s217 = ssub.s32 %s21, %s28
      %p218 = scmp.eq.s32.totalorder %s217, 0
      %s220 = sadd.s32 %s219, 1
      %s221 = scalar_select %p218, %s219, %s220
      %p224 = pneg %p218
      %p225 = scmp.eq.s32.totalorder %s21, 1
      %p226 = por %p224, %p225
      %p227 = scmp.ne.s32.totalorder %s219, %s222
      %p228 = scmp.eq.s32.totalorder %s21, 0
      %p229 = por %p227, %p228
      %p230 = scmp.ne.s32.totalorder %s219, %s222
      %p231 = scmp.eq.s32.totalorder %s26, 1
      %p232 = por %p230, %p231
      %p233 = scmp.ne.s32.totalorder %s222, %s223
      %p234 = scmp.eq.s32.totalorder %s26, 0
      %p235 = por %p233, %p234
      %p236 = scmp.ne.s32.totalorder %s222, %s223
      %p237 = scmp.eq.s32.totalorder %s27, 1
      %p238 = por %p236, %p237
      %p240 = scmp.ne.s32.totalorder %s223, %s239
      %p241 = scmp.eq.s32.totalorder %s27, 0
      %p242 = por %p240, %p241
      %p243 = scmp.le.s32.totalorder 1, %s21
      %p244 = scmp.lt.s32.totalorder %s21, 3
      %p245 = pnand %p243, %p244
      %p246 = pneg %p245
      // Predicated region
      $region9: #{char_rnn_forward.1} parent=5 // pred_check
        _
      $region10: #{char_rnn_forward.1} parent=5 // pred_check_branch
        %248 = sbr.rel (%p245) target = $region12
      $region11: #{char_rnn_forward.1} parent=5 // pred_region
        %s249 = ssub.s32 %s21, 1
        // Predicated region
        $region13: #{char_rnn_forward.1} parent=11 // pred_check
          %p250 = pneg %p42
        $region14: #{char_rnn_forward.1} parent=11 // pred_check_branch
          %252 = sbr.rel (%p250) target = $region16
        $region15: #{char_rnn_forward.1} parent=11 // pred_region
          _
        $region16: #{char_rnn_forward.1} parent=11 // pred_fallthru
          _
        // Predicated region
        $region17: #{char_rnn_forward.1} parent=11 // pred_check
          %p253 = pneg %p167
        $region18: #{char_rnn_forward.1} parent=11 // pred_check_branch
          %255 = sbr.rel (%p253) target = $region20
        $region19: #{char_rnn_forward.1} parent=11 // pred_region
          _
        $region20: #{char_rnn_forward.1} parent=11 // pred_fallthru
          _
        // Predicated region
        $region21: #{char_rnn_forward.1} parent=11 // pred_check
          %p256 = pneg %p188
        $region22: #{char_rnn_forward.1} parent=11 // pred_check_branch
          %258 = sbr.rel (%p256) target = $region24
        $region23: #{char_rnn_forward.1} parent=11 // pred_region
          _
        $region24: #{char_rnn_forward.1} parent=11 // pred_fallthru
          _
      $region12: #{char_rnn_forward.1} parent=5 // pred_fallthru
        _
      %p259 = scmp.lt.s32.totalorder %s21, 2
      // Predicated region
      $region25: #{char_rnn_forward.1} parent=5 // pred_check
        %p260 = pneg %p259
      $region26: #{char_rnn_forward.1} parent=5 // pred_check_branch
        %262 = sbr.rel (%p260) target = $region28
      $region27: #{char_rnn_forward.1} parent=5 // pred_region
        // Predicated region
        $region29: #{char_rnn_forward.1} parent=27 // pred_check
          %p263 = pneg %p62
        $region30: #{char_rnn_forward.1} parent=27 // pred_check_branch
          %265 = sbr.rel (%p263) target = $region32
        $region31: #{char_rnn_forward.1} parent=27 // pred_region
          %s266 = sand.u32 %s52, 1
          %s267 = scalar_lea.sflag [#allocation5], %s266
          %s268 = sand.u32 %s52, 1
          %s269 = smul.addr %s268, 384
          %s270 = scalar_lea.vmem [#allocation4], %s269
          %s272 = ssub.s32 6144, 6144
          %273 = vsyncadd %s267, %s272
          %s274 = smul.addr %s21, 48
          %s275 = smul.addr %s274, 128
          %s276 = scalar_lea.hbm %s1, %s275
          %s277 = sshll.u32 %s270, 4
          %s278 = int_to_ptr.vmem [resolvable:$true] %s277
          %283 = dma.hbm_to_vmem [thread:$0]  %s276, 6144, %s278, %s267, 384, 384, 24
        $region32: #{char_rnn_forward.1} parent=27 // pred_fallthru
          _
        // Predicated region
        $region33: #{char_rnn_forward.1} parent=27 // pred_check
          %p284 = pneg %p88
        $region34: #{char_rnn_forward.1} parent=27 // pred_check_branch
          %286 = sbr.rel (%p284) target = $region36
        $region35: #{char_rnn_forward.1} parent=27 // pred_region
          %s287 = sand.u32 %s78, 1
          %s288 = scalar_lea.sflag [#allocation7], %s287
          %s289 = sand.u32 %s78, 1
          %s290 = smul.addr %s289, 384
          %s291 = scalar_lea.vmem [#allocation6], %s290
          %s293 = ssub.s32 6144, 6144
          %294 = vsyncadd %s288, %s293
          %s295 = smul.addr %s21, 48
          %s296 = smul.addr %s295, 128
          %s297 = scalar_lea.hbm %s2, %s296
          %s298 = sshll.u32 %s291, 4
          %s299 = int_to_ptr.vmem [resolvable:$true] %s298
          %304 = dma.hbm_to_vmem [thread:$0]  %s297, 6144, %s299, %s288, 384, 384, 24
        $region36: #{char_rnn_forward.1} parent=27 // pred_fallthru
          _
        // Predicated region
        $region37: #{char_rnn_forward.1} parent=27 // pred_check
          %p305 = pneg %p114
        $region38: #{char_rnn_forward.1} parent=27 // pred_check_branch
          %307 = sbr.rel (%p305) target = $region40
        $region39: #{char_rnn_forward.1} parent=27 // pred_region
          %p308 = scmp.lt.s32.totalorder %s21, 1
          %s309 = scalar_select %p308, %s21, 1
          %s310 = smul.addr %s309, 3
          %s311 = scalar_lea.vmem %s3, %s310
        $region40: #{char_rnn_forward.1} parent=27 // pred_fallthru
          _
        // Predicated region
        $region41: #{char_rnn_forward.1} parent=27 // pred_check
          %p312 = pneg %p140
        $region42: #{char_rnn_forward.1} parent=27 // pred_check_branch
          %314 = sbr.rel (%p312) target = $region44
        $region43: #{char_rnn_forward.1} parent=27 // pred_region
          %p315 = scmp.lt.s32.totalorder %s21, 1
          %s316 = scalar_select %p315, %s21, 1
          %s317 = smul.addr %s316, 3
          %s318 = scalar_lea.vmem %s4, %s317
        $region44: #{char_rnn_forward.1} parent=27 // pred_fallthru
          _
      $region28: #{char_rnn_forward.1} parent=5 // pred_fallthru
        _
      %p319 = scmp.le.s32.totalorder 1, %s21
      %p320 = scmp.lt.s32.totalorder %s21, 3
      %p321 = pnand %p319, %p320
      %p322 = pneg %p321
      // Predicated region
      $region45: #{char_rnn_forward.1} parent=5 // pred_check
        _
      $region46: #{char_rnn_forward.1} parent=5 // pred_check_branch
        %324 = sbr.rel (%p321) target = $region48
      $region47: #{char_rnn_forward.1} parent=5 // pred_region
        %s325 = ssub.s32 %s21, 1
        %s326 = sand.u32 %s55, 1
        %s327 = scalar_lea.sflag [#allocation5], %s326
        %s328 = sand.u32 %s55, 1
        %s329 = smul.addr %s328, 384
        %s330 = scalar_lea.vmem [#allocation4], %s329
        // Predicated region
        $region49: #{char_rnn_forward.1} parent=47 // pred_check
          %p331 = pneg %p68
        $region50: #{char_rnn_forward.1} parent=47 // pred_check_branch
          %333 = sbr.rel (%p331) target = $region52
        $region51: #{char_rnn_forward.1} parent=47 // pred_region
          %334 = dma.done %s327, 6144
        $region52: #{char_rnn_forward.1} parent=47 // pred_fallthru
          _
        %s335 = sand.u32 %s81, 1
        %s336 = scalar_lea.sflag [#allocation7], %s335
        %s337 = sand.u32 %s81, 1
        %s338 = smul.addr %s337, 384
        %s339 = scalar_lea.vmem [#allocation6], %s338
        // Predicated region
        $region53: #{char_rnn_forward.1} parent=47 // pred_check
          %p340 = pneg %p94
        $region54: #{char_rnn_forward.1} parent=47 // pred_check_branch
          %342 = sbr.rel (%p340) target = $region56
        $region55: #{char_rnn_forward.1} parent=47 // pred_region
          %343 = dma.done %s336, 6144
        $region56: #{char_rnn_forward.1} parent=47 // pred_fallthru
          _
        %p344 = pneg %p42
        %p345 = pneg %p39
        %s346 = sand.u32 %s55, 1
        %s347 = scalar_lea.sflag [#allocation5], %s346
        %s348 = sand.u32 %s55, 1
        %s349 = smul.addr %s348, 384
        %s350 = scalar_lea.vmem [#allocation4], %s349
        %p351 = pneg %p68
        %p352 = pneg %p65
        %s353 = sand.u32 %s81, 1
        %s354 = scalar_lea.sflag [#allocation7], %s353
        %s355 = sand.u32 %s81, 1
        %s356 = smul.addr %s355, 384
        %s357 = scalar_lea.vmem [#allocation6], %s356
        %p358 = pneg %p94
        %p359 = pneg %p91
        %p360 = scmp.lt.s32.totalorder %s26, 1
        %s361 = scalar_select %p360, %s26, 1
        %s362 = smul.addr %s361, 3
        %s363 = scalar_lea.vmem %s3, %s362
        %p364 = pneg %p120
        %p365 = pneg %p117
        %p366 = scmp.lt.s32.totalorder %s26, 1
        %s367 = scalar_select %p366, %s26, 1
        %s368 = smul.addr %s367, 3
        %s369 = scalar_lea.vmem %s4, %s368
        %p370 = pneg %p146
        %p371 = pneg %p143
        %p372 = pneg %p167
        %p373 = pneg %p164
        %p374 = pneg %p188
        %p375 = pneg %p185
        %p376 = pneg %p209
        %p377 = pneg %p206
        %p378 = pneg %p235
        %p379 = pneg %p232
        %p380 = scmp.lt.s32.totalorder %s26, 1
        %s381 = scalar_select %p380, %s26, 1
        %s382 = smul.addr %s381, 8
        %s383 = scalar_lea.vmem %s8, %s382
        %p384 = scmp.lt.s32.totalorder %s26, 1
        %s385 = scalar_select %p384, %s26, 1
        %s386 = smul.addr %s385, 3
        %s387 = scalar_lea.vmem %s3, %s386
        %p388 = scmp.lt.s32.totalorder %s26, 1
        %s389 = scalar_select %p388, %s26, 1
        %s390 = smul.addr %s389, 3
        %s391 = scalar_lea.vmem %s4, %s390
        %p392 = scmp.lt.s32.totalorder %s26, 1
        %s393 = scalar_select %p392, %s26, 1
        %s394 = smul.addr %s393, 8
        %s395 = scalar_lea.vmem %s8, %s394
        %p396 = scmp.eq.s32.totalorder %s26, 0
        // Predicated region
        $region57: #{char_rnn_forward.1} parent=47 // pred_check
          %p397 = pneg %p396
        $region58: #{char_rnn_forward.1} parent=47 // pred_check_branch
          %399 = sbr.rel (%p397) target = $region60
        $region59: #{char_rnn_forward.1} parent=47 // pred_region
          %v400 = vld [vmem:[%s0] sm:$0xff]
          %v401 = vld [vmem:[%s0 + $0x8] sm:$0xff]
          %v402 = vld [vmem:[%s0 + $0x10] sm:$0xff]
          %v403 = vld [vmem:[%s0 + $0x18] sm:$0xff]
          %v404 = vld [vmem:[%s0 + $0x20] sm:$0xff]
          %v405 = vld [vmem:[%s0 + $0x28] sm:$0xff]
          %v406 = vld [vmem:[%s0 + $0x30] sm:$0xff]
          %v407 = vld [vmem:[%s0 + $0x38] sm:$0xff]
          %408 = vst [vmem:[#allocation2] sm:$0xff] %v400
          %409 = vst [vmem:[#allocation2 + $0x8] sm:$0xff] %v401
          %410 = vst [vmem:[#allocation2 + $0x10] sm:$0xff] %v402
          %411 = vst [vmem:[#allocation2 + $0x18] sm:$0xff] %v403
          %412 = vst [vmem:[#allocation2 + $0x20] sm:$0xff] %v404
          %413 = vst [vmem:[#allocation2 + $0x28] sm:$0xff] %v405
          %414 = vst [vmem:[#allocation2 + $0x30] sm:$0xff] %v406
          %415 = vst [vmem:[#allocation2 + $0x38] sm:$0xff] %v407
        $region60: #{char_rnn_forward.1} parent=47 // pred_fallthru
          _
        %v416 = vld [vmem:[#allocation2] sm:$0xff]
        %v417 = vld [vmem:[#allocation2 + $0x8] sm:$0xff]
        %v418 = vld [vmem:[#allocation2 + $0x10] sm:$0xff]
        %v419 = vld [vmem:[#allocation2 + $0x18] sm:$0xff]
        %v420 = vld [vmem:[#allocation2 + $0x20] sm:$0xff]
        %v421 = vld [vmem:[#allocation2 + $0x28] sm:$0xff]
        %v422 = vld [vmem:[#allocation2 + $0x30] sm:$0xff]
        %v423 = vld [vmem:[#allocation2 + $0x38] sm:$0xff]
        %v424 = vld [vmem:[%s330] sm:$0xff]
        %v425 = vld [vmem:[%s330 + $0x8] sm:$0xff]
        %v426 = vld [vmem:[%s330 + $0x10] sm:$0xff]
        %v427 = vld [vmem:[%s330 + $0x18] sm:$0xff]
        %v428 = vld [vmem:[%s330 + $0x20] sm:$0xff]
        %v429 = vld [vmem:[%s330 + $0x28] sm:$0xff]
        %v430 = vld [vmem:[%s330 + $0x30] sm:$0xff]
        %v431 = vld [vmem:[%s330 + $0x38] sm:$0xff]
        %v432 = vld [vmem:[%s330 + $0x40] sm:$0xff]
        %v433 = vld [vmem:[%s330 + $0x48] sm:$0xff]
        %v434 = vld [vmem:[%s330 + $0x50] sm:$0xff]
        %v435 = vld [vmem:[%s330 + $0x58] sm:$0xff]
        %v436 = vld [vmem:[%s330 + $0x60] sm:$0xff]
        %v437 = vld [vmem:[%s330 + $0x68] sm:$0xff]
        %v438 = vld [vmem:[%s330 + $0x70] sm:$0xff]
        %v439 = vld [vmem:[%s330 + $0x78] sm:$0xff]
        %v440 = vld [vmem:[%s330 + $0x80] sm:$0xff]
        %v441 = vld [vmem:[%s330 + $0x88] sm:$0xff]
        %v442 = vld [vmem:[%s330 + $0x90] sm:$0xff]
        %v443 = vld [vmem:[%s330 + $0x98] sm:$0xff]
        %v444 = vld [vmem:[%s330 + $0xa0] sm:$0xff]
        %v445 = vld [vmem:[%s330 + $0xa8] sm:$0xff]
        %v446 = vld [vmem:[%s330 + $0xb0] sm:$0xff]
        %v447 = vld [vmem:[%s330 + $0xb8] sm:$0xff]
        %v448 = vld [vmem:[%s330 + $0xc0] sm:$0xff]
        %v449 = vld [vmem:[%s330 + $0xc8] sm:$0xff]
        %v450 = vld [vmem:[%s330 + $0xd0] sm:$0xff]
        %v451 = vld [vmem:[%s330 + $0xd8] sm:$0xff]
        %v452 = vld [vmem:[%s330 + $0xe0] sm:$0xff]
        %v453 = vld [vmem:[%s330 + $0xe8] sm:$0xff]
        %v454 = vld [vmem:[%s330 + $0xf0] sm:$0xff]
        %v455 = vld [vmem:[%s330 + $0xf8] sm:$0xff]
        %v456 = vld [vmem:[%s330 + $0x100] sm:$0xff]
        %v457 = vld [vmem:[%s330 + $0x108] sm:$0xff]
        %v458 = vld [vmem:[%s330 + $0x110] sm:$0xff]
        %v459 = vld [vmem:[%s330 + $0x118] sm:$0xff]
        %v460 = vld [vmem:[%s330 + $0x120] sm:$0xff]
        %v461 = vld [vmem:[%s330 + $0x128] sm:$0xff]
        %v462 = vld [vmem:[%s330 + $0x130] sm:$0xff]
        %v463 = vld [vmem:[%s330 + $0x138] sm:$0xff]
        %v464 = vld [vmem:[%s330 + $0x140] sm:$0xff]
        %v465 = vld [vmem:[%s330 + $0x148] sm:$0xff]
        %v466 = vld [vmem:[%s330 + $0x150] sm:$0xff]
        %v467 = vld [vmem:[%s330 + $0x158] sm:$0xff]
        %v468 = vld [vmem:[%s330 + $0x160] sm:$0xff]
        %v469 = vld [vmem:[%s330 + $0x168] sm:$0xff]
        %v470 = vld [vmem:[%s330 + $0x170] sm:$0xff]
        %v471 = vld [vmem:[%s330 + $0x178] sm:$0xff]
        %v472 = vld [vmem:[%s387] sm:$0x7]
        %v474 = vlaneseq
        %v475 = vshrl.u32 %v474, 7
        %v476 = vsub.s32 0, %v475
        %v477 = vrot.slane %v472, %v476
        %v478 = vlaneseq
        %v479 = vshrl.u32 %v478, 7
        %v480 = vsub.s32 1, %v479
        %v481 = vrot.slane %v472, %v480
        %v482 = vlaneseq
        %v483 = vshrl.u32 %v482, 7
        %v484 = vsub.s32 2, %v483
        %v485 = vrot.slane %v472, %v484
        %489 = vmatprep.subr.mxu0 %v425
        %490 = vmatpush1.msra.mxu0 %v424
        %491 = vmatprep.subr.mxu0 %v428
        %492 = vmatpush1.msra.mxu0 %v427
        %493 = vmatprep.subr.mxu0 %v431
        %494 = vmatpush1.msra.mxu0 %v430
        %495 = vmatprep.subr.mxu0 %v434
        %496 = vmatpush1.msra.mxu0 %v433
        %497 = vmatprep.subr.mxu0 %v437
        %498 = vmatpush1.msra.mxu0 %v436
        %499 = vmatprep.subr.mxu0 %v440
        %500 = vmatpush1.msra.mxu0 %v439
        %501 = vmatprep.subr.mxu0 %v443
        %502 = vmatpush1.msra.mxu0 %v442
        %503 = vmatprep.subr.mxu0 %v446
        %504 = vmatpush1.msra.mxu0 %v445
        %505 = vmatprep.subr.mxu0 %v449
        %506 = vmatpush1.msra.mxu0 %v448
        %507 = vmatprep.subr.mxu0 %v452
        %508 = vmatpush1.msra.mxu0 %v451
        %509 = vmatprep.subr.mxu0 %v455
        %510 = vmatpush1.msra.mxu0 %v454
        %511 = vmatprep.subr.mxu0 %v458
        %512 = vmatpush1.msra.mxu0 %v457
        %513 = vmatprep.subr.mxu0 %v461
        %514 = vmatpush1.msra.mxu0 %v460
        %515 = vmatprep.subr.mxu0 %v464
        %516 = vmatpush1.msra.mxu0 %v463
        %517 = vmatprep.subr.mxu0 %v467
        %518 = vmatpush1.msra.mxu0 %v466
        %519 = vmatprep.subr.mxu0 %v470
        %520 = vmatpush1.msra.mxu0 %v469
        %521 = vmatprep.subr.mxu0 0.0
        %522 = vmatpush1.msra.mxu0 0.0
        %523 = vmatprep.subr.mxu0 0.0
        %524 = vmatpush1.msra.mxu0 0.0
        %525 = vmatprep.subr.mxu0 0.0
        %526 = vmatpush1.msra.mxu0 0.0
        %527 = vmatprep.subr.mxu0 0.0
        %528 = vmatpush1.msra.mxu0 0.0
        %529 = vmatprep.subr.mxu0 0.0
        %530 = vmatpush1.msra.mxu0 0.0
        %531 = vmatprep.subr.mxu0 0.0
        %532 = vmatpush1.msra.mxu0 0.0
        %533 = vmatprep.subr.mxu0 0.0
        %534 = vmatpush1.msra.mxu0 0.0
        %535 = vmatprep.subr.mxu0 0.0
        %536 = vmatpush1.msra.mxu0 0.0
        %537 = vmatprep.subr.mxu0 0.0
        %538 = vmatpush1.msra.mxu0 0.0
        %539 = vmatprep.subr.mxu0 0.0
        %540 = vmatpush1.msra.mxu0 0.0
        %541 = vmatprep.subr.mxu0 0.0
        %542 = vmatpush1.msra.mxu0 0.0
        %543 = vmatprep.subr.mxu0 0.0
        %544 = vmatpush1.msra.mxu0 0.0
        %545 = vmatprep.subr.mxu0 0.0
        %546 = vmatpush1.msra.mxu0 0.0
        %547 = vmatprep.subr.mxu0 0.0
        %548 = vmatpush1.msra.mxu0 0.0
        %549 = vmatprep.subr.mxu0 0.0
        %550 = vmatpush1.msra.mxu0 0.0
        %551 = vmatprep.subr.mxu0 0.0
        %552 = vmatpush1.msra.mxu0 0.0
        %553 = vmatprep.mubr.f32.mxu0 0.0
        %554 = vmatmul.mubr.f32.gmra.mrb[0].mxu0 %v416
        %v555 = vpop.f32.mrb[0].mxu0
        %v556 = vadd.f32 %v477, %v555
        %v557 = vpop.f32.mrb[0].mxu0
        %v558 = vadd.f32 %v481, %v557
        %559 = vmatprep.mubr.f32.mxu0 0.0
        %560 = vmatmul.mubr.f32.gmra.mrb[0].mxu0 %v417
        %v561 = vpop.f32.mrb[0].mxu0
        %v562 = vadd.f32 %v477, %v561
        %v563 = vpop.f32.mrb[0].mxu0
        %v564 = vadd.f32 %v481, %v563
        %565 = vmatprep.mubr.f32.mxu0 0.0
        %566 = vmatmul.mubr.f32.gmra.mrb[0].mxu0 %v418
        %v567 = vpop.f32.mrb[0].mxu0
        %v568 = vadd.f32 %v477, %v567
        %v569 = vpop.f32.mrb[0].mxu0
        %v570 = vadd.f32 %v481, %v569
        %571 = vmatprep.mubr.f32.mxu0 0.0
        %572 = vmatmul.mubr.f32.gmra.mrb[0].mxu0 %v419
        %v573 = vpop.f32.mrb[0].mxu0
        %v574 = vadd.f32 %v477, %v573
        %v575 = vpop.f32.mrb[0].mxu0
        %v576 = vadd.f32 %v481, %v575
        %577 = vmatprep.mubr.f32.mxu0 0.0
        %578 = vmatmul.mubr.f32.gmra.mrb[0].mxu0 %v420
        %v579 = vpop.f32.mrb[0].mxu0
        %v580 = vadd.f32 %v477, %v579
        %v581 = vpop.f32.mrb[0].mxu0
        %v582 = vadd.f32 %v481, %v581
        %583 = vmatprep.mubr.f32.mxu0 0.0
        %584 = vmatmul.mubr.f32.gmra.mrb[0].mxu0 %v421
        %v585 = vpop.f32.mrb[0].mxu0
        %v586 = vadd.f32 %v477, %v585
        %v587 = vpop.f32.mrb[0].mxu0
        %v588 = vadd.f32 %v481, %v587
        %589 = vmatprep.mubr.f32.mxu0 0.0
        %590 = vmatmul.mubr.f32.gmra.mrb[0].mxu0 %v422
        %v591 = vpop.f32.mrb[0].mxu0
        %v592 = vadd.f32 %v477, %v591
        %v593 = vpop.f32.mrb[0].mxu0
        %v594 = vadd.f32 %v481, %v593
        %595 = vmatprep.mubr.f32.mxu0 0.0
        %596 = vmatmul.mubr.f32.gmra.mrb[0].mxu0 %v423
        %v597 = vpop.f32.mrb[0].mxu0
        %v598 = vadd.f32 %v477, %v597
        %v599 = vpop.f32.mrb[0].mxu0
        %v600 = vadd.f32 %v481, %v599
        %601 = vdwg.mxu0
        %602 = vmatprep.subr.mxu0 0.0
        %603 = vmatpush1.msra.mxu0 %v426
        %604 = vmatprep.subr.mxu0 0.0
        %605 = vmatpush1.msra.mxu0 %v429
        %606 = vmatprep.subr.mxu0 0.0
        %607 = vmatpush1.msra.mxu0 %v432
        %608 = vmatprep.subr.mxu0 0.0
        %609 = vmatpush1.msra.mxu0 %v435
        %610 = vmatprep.subr.mxu0 0.0
        %611 = vmatpush1.msra.mxu0 %v438
        %612 = vmatprep.subr.mxu0 0.0
        %613 = vmatpush1.msra.mxu0 %v441
        %614 = vmatprep.subr.mxu0 0.0
        %615 = vmatpush1.msra.mxu0 %v444
        %616 = vmatprep.subr.mxu0 0.0
        %617 = vmatpush1.msra.mxu0 %v447
        %618 = vmatprep.subr.mxu0 0.0
        %619 = vmatpush1.msra.mxu0 %v450
        %620 = vmatprep.subr.mxu0 0.0
        %621 = vmatpush1.msra.mxu0 %v453
        %622 = vmatprep.subr.mxu0 0.0
        %623 = vmatpush1.msra.mxu0 %v456
        %624 = vmatprep.subr.mxu0 0.0
        %625 = vmatpush1.msra.mxu0 %v459
        %626 = vmatprep.subr.mxu0 0.0
        %627 = vmatpush1.msra.mxu0 %v462
        %628 = vmatprep.subr.mxu0 0.0
        %629 = vmatpush1.msra.mxu0 %v465
        %630 = vmatprep.subr.mxu0 0.0
        %631 = vmatpush1.msra.mxu0 %v468
        %632 = vmatprep.subr.mxu0 0.0
        %633 = vmatpush1.msra.mxu0 %v471
        %634 = vmatprep.subr.mxu0 0.0
        %635 = vmatpush1.msra.mxu0 0.0
        %636 = vmatprep.subr.mxu0 0.0
        %637 = vmatpush1.msra.mxu0 0.0
        %638 = vmatprep.subr.mxu0 0.0
        %639 = vmatpush1.msra.mxu0 0.0
        %640 = vmatprep.subr.mxu0 0.0
        %641 = vmatpush1.msra.mxu0 0.0
        %642 = vmatprep.subr.mxu0 0.0
        %643 = vmatpush1.msra.mxu0 0.0
        %644 = vmatprep.subr.mxu0 0.0
        %645 = vmatpush1.msra.mxu0 0.0
        %646 = vmatprep.subr.mxu0 0.0
        %647 = vmatpush1.msra.mxu0 0.0
        %648 = vmatprep.subr.mxu0 0.0
        %649 = vmatpush1.msra.mxu0 0.0
        %650 = vmatprep.subr.mxu0 0.0
        %651 = vmatpush1.msra.mxu0 0.0
        %652 = vmatprep.subr.mxu0 0.0
        %653 = vmatpush1.msra.mxu0 0.0
        %654 = vmatprep.subr.mxu0 0.0
        %655 = vmatpush1.msra.mxu0 0.0
        %656 = vmatprep.subr.mxu0 0.0
        %657 = vmatpush1.msra.mxu0 0.0
        %658 = vmatprep.subr.mxu0 0.0
        %659 = vmatpush1.msra.mxu0 0.0
        %660 = vmatprep.subr.mxu0 0.0
        %661 = vmatpush1.msra.mxu0 0.0
        %662 = vmatprep.subr.mxu0 0.0
        %663 = vmatpush1.msra.mxu0 0.0
        %664 = vmatprep.subr.mxu0 0.0
        %665 = vmatpush1.msra.mxu0 0.0
        %666 = vmatprep.mubr.f32.mxu0 0.0
        %667 = vmatmul.mubr.f32.gmra.mrb[0].mxu0 %v416
        %v668 = vpop.f32.mrb[0].mxu0
        %v669 = vadd.f32 %v485, %v668
        %v670 = vpop.f32.mrb[0].mxu0
        %671 = vmatprep.mubr.f32.mxu0 0.0
        %672 = vmatmul.mubr.f32.gmra.mrb[0].mxu0 %v417
        %v673 = vpop.f32.mrb[0].mxu0
        %v674 = vadd.f32 %v485, %v673
        %v675 = vpop.f32.mrb[0].mxu0
        %676 = vmatprep.mubr.f32.mxu0 0.0
        %677 = vmatmul.mubr.f32.gmra.mrb[0].mxu0 %v418
        %v678 = vpop.f32.mrb[0].mxu0
        %v679 = vadd.f32 %v485, %v678
        %v680 = vpop.f32.mrb[0].mxu0
        %681 = vmatprep.mubr.f32.mxu0 0.0
        %682 = vmatmul.mubr.f32.gmra.mrb[0].mxu0 %v419
        %v683 = vpop.f32.mrb[0].mxu0
        %v684 = vadd.f32 %v485, %v683
        %v685 = vpop.f32.mrb[0].mxu0
        %686 = vmatprep.mubr.f32.mxu0 0.0
        %687 = vmatmul.mubr.f32.gmra.mrb[0].mxu0 %v420
        %v688 = vpop.f32.mrb[0].mxu0
        %v689 = vadd.f32 %v485, %v688
        %v690 = vpop.f32.mrb[0].mxu0
        %691 = vmatprep.mubr.f32.mxu0 0.0
        %692 = vmatmul.mubr.f32.gmra.mrb[0].mxu0 %v421
        %v693 = vpop.f32.mrb[0].mxu0
        %v694 = vadd.f32 %v485, %v693
        %v695 = vpop.f32.mrb[0].mxu0
        %696 = vmatprep.mubr.f32.mxu0 0.0
        %697 = vmatmul.mubr.f32.gmra.mrb[0].mxu0 %v422
        %v698 = vpop.f32.mrb[0].mxu0
        %v699 = vadd.f32 %v485, %v698
        %v700 = vpop.f32.mrb[0].mxu0
        %701 = vmatprep.mubr.f32.mxu0 0.0
        %702 = vmatmul.mubr.f32.gmra.mrb[0].mxu0 %v423
        %v703 = vpop.f32.mrb[0].mxu0
        %v704 = vadd.f32 %v485, %v703
        %v705 = vpop.f32.mrb[0].mxu0
        %706 = vdwg.mxu0
        %707 = vst [vmem:[#allocation3] sm:$0xff] %v556
        %708 = vst [vmem:[#allocation3 + $0x8] sm:$0xff] %v558
        %709 = vst [vmem:[#allocation3 + $0x10] sm:$0xff] %v669
        %710 = vst [vmem:[#allocation3 + $0x18] sm:$0xff] %v562
        %711 = vst [vmem:[#allocation3 + $0x20] sm:$0xff] %v564
        %712 = vst [vmem:[#allocation3 + $0x28] sm:$0xff] %v674
        %713 = vst [vmem:[#allocation3 + $0x30] sm:$0xff] %v568
        %714 = vst [vmem:[#allocation3 + $0x38] sm:$0xff] %v570
        %715 = vst [vmem:[#allocation3 + $0x40] sm:$0xff] %v679
        %716 = vst [vmem:[#allocation3 + $0x48] sm:$0xff] %v574
        %717 = vst [vmem:[#allocation3 + $0x50] sm:$0xff] %v576
        %718 = vst [vmem:[#allocation3 + $0x58] sm:$0xff] %v684
        %719 = vst [vmem:[#allocation3 + $0x60] sm:$0xff] %v580
        %720 = vst [vmem:[#allocation3 + $0x68] sm:$0xff] %v582
        %721 = vst [vmem:[#allocation3 + $0x70] sm:$0xff] %v689
        %722 = vst [vmem:[#allocation3 + $0x78] sm:$0xff] %v586
        %723 = vst [vmem:[#allocation3 + $0x80] sm:$0xff] %v588
        %724 = vst [vmem:[#allocation3 + $0x88] sm:$0xff] %v694
        %725 = vst [vmem:[#allocation3 + $0x90] sm:$0xff] %v592
        %726 = vst [vmem:[#allocation3 + $0x98] sm:$0xff] %v594
        %727 = vst [vmem:[#allocation3 + $0xa0] sm:$0xff] %v699
        %728 = vst [vmem:[#allocation3 + $0xa8] sm:$0xff] %v598
        %729 = vst [vmem:[#allocation3 + $0xb0] sm:$0xff] %v600
        %730 = vst [vmem:[#allocation3 + $0xb8] sm:$0xff] %v704
        %v731 = vld [vmem:[%s339] sm:$0xff]
        %v732 = vld [vmem:[%s339 + $0x8] sm:$0xff]
        %v733 = vld [vmem:[%s339 + $0x10] sm:$0xff]
        %v734 = vld [vmem:[%s339 + $0x18] sm:$0xff]
        %v735 = vld [vmem:[%s339 + $0x20] sm:$0xff]
        %v736 = vld [vmem:[%s339 + $0x28] sm:$0xff]
        %v737 = vld [vmem:[%s339 + $0x30] sm:$0xff]
        %v738 = vld [vmem:[%s339 + $0x38] sm:$0xff]
        %v739 = vld [vmem:[%s339 + $0x40] sm:$0xff]
        %v740 = vld [vmem:[%s339 + $0x48] sm:$0xff]
        %v741 = vld [vmem:[%s339 + $0x50] sm:$0xff]
        %v742 = vld [vmem:[%s339 + $0x58] sm:$0xff]
        %v743 = vld [vmem:[%s339 + $0x60] sm:$0xff]
        %v744 = vld [vmem:[%s339 + $0x68] sm:$0xff]
        %v745 = vld [vmem:[%s339 + $0x70] sm:$0xff]
        %v746 = vld [vmem:[%s339 + $0x78] sm:$0xff]
        %v747 = vld [vmem:[%s339 + $0x80] sm:$0xff]
        %v748 = vld [vmem:[%s339 + $0x88] sm:$0xff]
        %v749 = vld [vmem:[%s339 + $0x90] sm:$0xff]
        %v750 = vld [vmem:[%s339 + $0x98] sm:$0xff]
        %v751 = vld [vmem:[%s339 + $0xa0] sm:$0xff]
        %v752 = vld [vmem:[%s339 + $0xa8] sm:$0xff]
        %v753 = vld [vmem:[%s339 + $0xb0] sm:$0xff]
        %v754 = vld [vmem:[%s339 + $0xb8] sm:$0xff]
        %v755 = vld [vmem:[%s339 + $0xc0] sm:$0xff]
        %v756 = vld [vmem:[%s339 + $0xc8] sm:$0xff]
        %v757 = vld [vmem:[%s339 + $0xd0] sm:$0xff]
        %v758 = vld [vmem:[%s339 + $0xd8] sm:$0xff]
        %v759 = vld [vmem:[%s339 + $0xe0] sm:$0xff]
        %v760 = vld [vmem:[%s339 + $0xe8] sm:$0xff]
        %v761 = vld [vmem:[%s339 + $0xf0] sm:$0xff]
        %v762 = vld [vmem:[%s339 + $0xf8] sm:$0xff]
        %v763 = vld [vmem:[%s339 + $0x100] sm:$0xff]
        %v764 = vld [vmem:[%s339 + $0x108] sm:$0xff]
        %v765 = vld [vmem:[%s339 + $0x110] sm:$0xff]
        %v766 = vld [vmem:[%s339 + $0x118] sm:$0xff]
        %v767 = vld [vmem:[%s339 + $0x120] sm:$0xff]
        %v768 = vld [vmem:[%s339 + $0x128] sm:$0xff]
        %v769 = vld [vmem:[%s339 + $0x130] sm:$0xff]
        %v770 = vld [vmem:[%s339 + $0x138] sm:$0xff]
        %v771 = vld [vmem:[%s339 + $0x140] sm:$0xff]
        %v772 = vld [vmem:[%s339 + $0x148] sm:$0xff]
        %v773 = vld [vmem:[%s339 + $0x150] sm:$0xff]
        %v774 = vld [vmem:[%s339 + $0x158] sm:$0xff]
        %v775 = vld [vmem:[%s339 + $0x160] sm:$0xff]
        %v776 = vld [vmem:[%s339 + $0x168] sm:$0xff]
        %v777 = vld [vmem:[%s339 + $0x170] sm:$0xff]
        %v778 = vld [vmem:[%s339 + $0x178] sm:$0xff]
        %v779 = vld [vmem:[%s391] sm:$0x7]
        %v781 = vlaneseq
        %v782 = vshrl.u32 %v781, 7
        %v783 = vsub.s32 0, %v782
        %v784 = vrot.slane %v779, %v783
        %v785 = vlaneseq
        %v786 = vshrl.u32 %v785, 7
        %v787 = vsub.s32 1, %v786
        %v788 = vrot.slane %v779, %v787
        %v789 = vlaneseq
        %v790 = vshrl.u32 %v789, 7
        %v791 = vsub.s32 2, %v790
        %v792 = vrot.slane %v779, %v791
        %v796 = vld [vmem:[#allocation3] sm:$0xff]
        %v797 = vld [vmem:[#allocation3 + $0x8] sm:$0xff]
        %v798 = vld [vmem:[#allocation3 + $0x10] sm:$0xff]
        %799 = vmatprep.subr.mxu0 %v732
        %800 = vmatpush1.msra.mxu0 %v731
        %801 = vmatprep.subr.mxu0 %v735
        %802 = vmatpush1.msra.mxu0 %v734
        %803 = vmatprep.subr.mxu0 %v738
        %804 = vmatpush1.msra.mxu0 %v737
        %805 = vmatprep.subr.mxu0 %v741
        %806 = vmatpush1.msra.mxu0 %v740
        %807 = vmatprep.subr.mxu0 %v744
        %808 = vmatpush1.msra.mxu0 %v743
        %809 = vmatprep.subr.mxu0 %v747
        %810 = vmatpush1.msra.mxu0 %v746
        %811 = vmatprep.subr.mxu0 %v750
        %812 = vmatpush1.msra.mxu0 %v749
        %813 = vmatprep.subr.mxu0 %v753
        %814 = vmatpush1.msra.mxu0 %v752
        %815 = vmatprep.subr.mxu0 %v756
        %816 = vmatpush1.msra.mxu0 %v755
        %817 = vmatprep.subr.mxu0 %v759
        %818 = vmatpush1.msra.mxu0 %v758
        %819 = vmatprep.subr.mxu0 %v762
        %820 = vmatpush1.msra.mxu0 %v761
        %821 = vmatprep.subr.mxu0 %v765
        %822 = vmatpush1.msra.mxu0 %v764
        %823 = vmatprep.subr.mxu0 %v768
        %824 = vmatpush1.msra.mxu0 %v767
        %825 = vmatprep.subr.mxu0 %v771
        %826 = vmatpush1.msra.mxu0 %v770
        %827 = vmatprep.subr.mxu0 %v774
        %828 = vmatpush1.msra.mxu0 %v773
        %829 = vmatprep.subr.mxu0 %v777
        %830 = vmatpush1.msra.mxu0 %v776
        %831 = vmatprep.subr.mxu0 0.0
        %832 = vmatpush1.msra.mxu0 0.0
        %833 = vmatprep.subr.mxu0 0.0
        %834 = vmatpush1.msra.mxu0 0.0
        %835 = vmatprep.subr.mxu0 0.0
        %836 = vmatpush1.msra.mxu0 0.0
        %837 = vmatprep.subr.mxu0 0.0
        %838 = vmatpush1.msra.mxu0 0.0
        %839 = vmatprep.subr.mxu0 0.0
        %840 = vmatpush1.msra.mxu0 0.0
        %841 = vmatprep.subr.mxu0 0.0
        %842 = vmatpush1.msra.mxu0 0.0
        %843 = vmatprep.subr.mxu0 0.0
        %844 = vmatpush1.msra.mxu0 0.0
        %845 = vmatprep.subr.mxu0 0.0
        %846 = vmatpush1.msra.mxu0 0.0
        %847 = vmatprep.subr.mxu0 0.0
        %848 = vmatpush1.msra.mxu0 0.0
        %849 = vmatprep.subr.mxu0 0.0
        %850 = vmatpush1.msra.mxu0 0.0
        %851 = vmatprep.subr.mxu0 0.0
        %852 = vmatpush1.msra.mxu0 0.0
        %853 = vmatprep.subr.mxu0 0.0
        %854 = vmatpush1.msra.mxu0 0.0
        %855 = vmatprep.subr.mxu0 0.0
        %856 = vmatpush1.msra.mxu0 0.0
        %857 = vmatprep.subr.mxu0 0.0
        %858 = vmatpush1.msra.mxu0 0.0
        %859 = vmatprep.subr.mxu0 0.0
        %860 = vmatpush1.msra.mxu0 0.0
        %861 = vmatprep.subr.mxu0 0.0
        %862 = vmatpush1.msra.mxu0 0.0
        %863 = vmatprep.mubr.f32.mxu0 0.0
        %864 = vmatmul.mubr.f32.gmra.mrb[0].mxu0 0.0
        %v865 = vpop.f32.mrb[0].mxu0
        %v866 = vadd.f32 %v784, %v865
        %v867 = vpop.f32.mrb[0].mxu0
        %v868 = vadd.f32 %v788, %v867
        %869 = vdwg.mxu0
        %870 = vmatprep.subr.mxu0 0.0
        %871 = vmatpush1.msra.mxu0 %v733
        %872 = vmatprep.subr.mxu0 0.0
        %873 = vmatpush1.msra.mxu0 %v736
        %874 = vmatprep.subr.mxu0 0.0
        %875 = vmatpush1.msra.mxu0 %v739
        %876 = vmatprep.subr.mxu0 0.0
        %877 = vmatpush1.msra.mxu0 %v742
        %878 = vmatprep.subr.mxu0 0.0
        %879 = vmatpush1.msra.mxu0 %v745
        %880 = vmatprep.subr.mxu0 0.0
        %881 = vmatpush1.msra.mxu0 %v748
        %882 = vmatprep.subr.mxu0 0.0
        %883 = vmatpush1.msra.mxu0 %v751
        %884 = vmatprep.subr.mxu0 0.0
        %885 = vmatpush1.msra.mxu0 %v754
        %886 = vmatprep.subr.mxu0 0.0
        %887 = vmatpush1.msra.mxu0 %v757
        %888 = vmatprep.subr.mxu0 0.0
        %889 = vmatpush1.msra.mxu0 %v760
        %890 = vmatprep.subr.mxu0 0.0
        %891 = vmatpush1.msra.mxu0 %v763
        %892 = vmatprep.subr.mxu0 0.0
        %893 = vmatpush1.msra.mxu0 %v766
        %894 = vmatprep.subr.mxu0 0.0
        %895 = vmatpush1.msra.mxu0 %v769
        %896 = vmatprep.subr.mxu0 0.0
        %897 = vmatpush1.msra.mxu0 %v772
        %898 = vmatprep.subr.mxu0 0.0
        %899 = vmatpush1.msra.mxu0 %v775
        %900 = vmatprep.subr.mxu0 0.0
        %901 = vmatpush1.msra.mxu0 %v778
        %902 = vmatprep.subr.mxu0 0.0
        %903 = vmatpush1.msra.mxu0 0.0
        %904 = vmatprep.subr.mxu0 0.0
        %905 = vmatpush1.msra.mxu0 0.0
        %906 = vmatprep.subr.mxu0 0.0
        %907 = vmatpush1.msra.mxu0 0.0
        %908 = vmatprep.subr.mxu0 0.0
        %909 = vmatpush1.msra.mxu0 0.0
        %910 = vmatprep.subr.mxu0 0.0
        %911 = vmatpush1.msra.mxu0 0.0
        %912 = vmatprep.subr.mxu0 0.0
        %913 = vmatpush1.msra.mxu0 0.0
        %914 = vmatprep.subr.mxu0 0.0
        %915 = vmatpush1.msra.mxu0 0.0
        %916 = vmatprep.subr.mxu0 0.0
        %917 = vmatpush1.msra.mxu0 0.0
        %918 = vmatprep.subr.mxu0 0.0
        %919 = vmatpush1.msra.mxu0 0.0
        %920 = vmatprep.subr.mxu0 0.0
        %921 = vmatpush1.msra.mxu0 0.0
        %922 = vmatprep.subr.mxu0 0.0
        %923 = vmatpush1.msra.mxu0 0.0
        %924 = vmatprep.subr.mxu0 0.0
        %925 = vmatpush1.msra.mxu0 0.0
        %926 = vmatprep.subr.mxu0 0.0
        %927 = vmatpush1.msra.mxu0 0.0
        %928 = vmatprep.subr.mxu0 0.0
        %929 = vmatpush1.msra.mxu0 0.0
        %930 = vmatprep.subr.mxu0 0.0
        %931 = vmatpush1.msra.mxu0 0.0
        %932 = vmatprep.subr.mxu0 0.0
        %933 = vmatpush1.msra.mxu0 0.0
        %934 = vmatprep.mubr.f32.mxu0 0.0
        %935 = vmatmul.mubr.f32.gmra.mrb[0].mxu0 0.0
        %v936 = vpop.f32.mrb[0].mxu0
        %v937 = vadd.f32 %v792, %v936
        %v938 = vpop.f32.mrb[0].mxu0
        %939 = vdwg.mxu0
        %v940 = vadd.f32 %v796, %v866
        %v941 = vadd.f32 %v797, %v868
        %v942 = vxor.u32 %v940, 2147483648
        %v943 = vxor.u32 %v941, 2147483648
        %v944 = vmul.f32 %v942, 1.442695
        %v945 = vpow.pop %v944
        %v946 = vmul.f32 %v943, 1.442695
        %v947 = vpow.pop %v946
        %v948 = vadd.f32 %v945, 1.0
        %v949 = vadd.f32 %v947, 1.0
        %v950 = vrcp.pop %v948
        %v951 = vmul.f32 1.0, %v950
        %v952 = vrcp.pop %v949
        %v953 = vmul.f32 1.0, %v952
        %v954 = vmul.f32 %v951, %v937
        %v955 = vadd.f32 %v798, %v954
        %v956 = vtanh.pop %v955
        %v957 = vsub.f32 0.0, %v956
        %v958 = vmul.f32 %v953, %v957
        %v959 = vadd.f32 %v956, %v958
        %960 = vst [vmem:[#allocation2] sm:$0xff] %v959
        %v961 = vld [vmem:[#allocation3 + $0x18] sm:$0xff]
        %v962 = vld [vmem:[#allocation3 + $0x20] sm:$0xff]
        %v963 = vld [vmem:[#allocation3 + $0x28] sm:$0xff]
        %964 = vmatprep.subr.mxu0 %v732
        %965 = vmatpush1.msra.mxu0 %v731
        %966 = vmatprep.subr.mxu0 %v735
        %967 = vmatpush1.msra.mxu0 %v734
        %968 = vmatprep.subr.mxu0 %v738
        %969 = vmatpush1.msra.mxu0 %v737
        %970 = vmatprep.subr.mxu0 %v741
        %971 = vmatpush1.msra.mxu0 %v740
        %972 = vmatprep.subr.mxu0 %v744
        %973 = vmatpush1.msra.mxu0 %v743
        %974 = vmatprep.subr.mxu0 %v747
        %975 = vmatpush1.msra.mxu0 %v746
        %976 = vmatprep.subr.mxu0 %v750
        %977 = vmatpush1.msra.mxu0 %v749
        %978 = vmatprep.subr.mxu0 %v753
        %979 = vmatpush1.msra.mxu0 %v752
        %980 = vmatprep.subr.mxu0 %v756
        %981 = vmatpush1.msra.mxu0 %v755
        %982 = vmatprep.subr.mxu0 %v759
        %983 = vmatpush1.msra.mxu0 %v758
        %984 = vmatprep.subr.mxu0 %v762
        %985 = vmatpush1.msra.mxu0 %v761
        %986 = vmatprep.subr.mxu0 %v765
        %987 = vmatpush1.msra.mxu0 %v764
        %988 = vmatprep.subr.mxu0 %v768
        %989 = vmatpush1.msra.mxu0 %v767
        %990 = vmatprep.subr.mxu0 %v771
        %991 = vmatpush1.msra.mxu0 %v770
        %992 = vmatprep.subr.mxu0 %v774
        %993 = vmatpush1.msra.mxu0 %v773
        %994 = vmatprep.subr.mxu0 %v777
        %995 = vmatpush1.msra.mxu0 %v776
        %996 = vmatprep.subr.mxu0 0.0
        %997 = vmatpush1.msra.mxu0 0.0
        %998 = vmatprep.subr.mxu0 0.0
        %999 = vmatpush1.msra.mxu0 0.0
        %1000 = vmatprep.subr.mxu0 0.0
        %1001 = vmatpush1.msra.mxu0 0.0
        %1002 = vmatprep.subr.mxu0 0.0
        %1003 = vmatpush1.msra.mxu0 0.0
        %1004 = vmatprep.subr.mxu0 0.0
        %1005 = vmatpush1.msra.mxu0 0.0
        %1006 = vmatprep.subr.mxu0 0.0
        %1007 = vmatpush1.msra.mxu0 0.0
        %1008 = vmatprep.subr.mxu0 0.0
        %1009 = vmatpush1.msra.mxu0 0.0
        %1010 = vmatprep.subr.mxu0 0.0
        %1011 = vmatpush1.msra.mxu0 0.0
        %1012 = vmatprep.subr.mxu0 0.0
        %1013 = vmatpush1.msra.mxu0 0.0
        %1014 = vmatprep.subr.mxu0 0.0
        %1015 = vmatpush1.msra.mxu0 0.0
        %1016 = vmatprep.subr.mxu0 0.0
        %1017 = vmatpush1.msra.mxu0 0.0
        %1018 = vmatprep.subr.mxu0 0.0
        %1019 = vmatpush1.msra.mxu0 0.0
        %1020 = vmatprep.subr.mxu0 0.0
        %1021 = vmatpush1.msra.mxu0 0.0
        %1022 = vmatprep.subr.mxu0 0.0
        %1023 = vmatpush1.msra.mxu0 0.0
        %1024 = vmatprep.subr.mxu0 0.0
        %1025 = vmatpush1.msra.mxu0 0.0
        %1026 = vmatprep.subr.mxu0 0.0
        %1027 = vmatpush1.msra.mxu0 0.0
        %1028 = vmatprep.mubr.f32.mxu0 0.0
        %1029 = vmatmul.mubr.f32.gmra.mrb[0].mxu0 %v959
        %v1030 = vpop.f32.mrb[0].mxu0
        %v1031 = vadd.f32 %v784, %v1030
        %v1032 = vpop.f32.mrb[0].mxu0
        %v1033 = vadd.f32 %v788, %v1032
        %1034 = vdwg.mxu0
        %1035 = vmatprep.subr.mxu0 0.0
        %1036 = vmatpush1.msra.mxu0 %v733
        %1037 = vmatprep.subr.mxu0 0.0
        %1038 = vmatpush1.msra.mxu0 %v736
        %1039 = vmatprep.subr.mxu0 0.0
        %1040 = vmatpush1.msra.mxu0 %v739
        %1041 = vmatprep.subr.mxu0 0.0
        %1042 = vmatpush1.msra.mxu0 %v742
        %1043 = vmatprep.subr.mxu0 0.0
        %1044 = vmatpush1.msra.mxu0 %v745
        %1045 = vmatprep.subr.mxu0 0.0
        %1046 = vmatpush1.msra.mxu0 %v748
        %1047 = vmatprep.subr.mxu0 0.0
        %1048 = vmatpush1.msra.mxu0 %v751
        %1049 = vmatprep.subr.mxu0 0.0
        %1050 = vmatpush1.msra.mxu0 %v754
        %1051 = vmatprep.subr.mxu0 0.0
        %1052 = vmatpush1.msra.mxu0 %v757
        %1053 = vmatprep.subr.mxu0 0.0
        %1054 = vmatpush1.msra.mxu0 %v760
        %1055 = vmatprep.subr.mxu0 0.0
        %1056 = vmatpush1.msra.mxu0 %v763
        %1057 = vmatprep.subr.mxu0 0.0
        %1058 = vmatpush1.msra.mxu0 %v766
        %1059 = vmatprep.subr.mxu0 0.0
        %1060 = vmatpush1.msra.mxu0 %v769
        %1061 = vmatprep.subr.mxu0 0.0
        %1062 = vmatpush1.msra.mxu0 %v772
        %1063 = vmatprep.subr.mxu0 0.0
        %1064 = vmatpush1.msra.mxu0 %v775
        %1065 = vmatprep.subr.mxu0 0.0
        %1066 = vmatpush1.msra.mxu0 %v778
        %1067 = vmatprep.subr.mxu0 0.0
        %1068 = vmatpush1.msra.mxu0 0.0
        %1069 = vmatprep.subr.mxu0 0.0
        %1070 = vmatpush1.msra.mxu0 0.0
        %1071 = vmatprep.subr.mxu0 0.0
        %1072 = vmatpush1.msra.mxu0 0.0
        %1073 = vmatprep.subr.mxu0 0.0
        %1074 = vmatpush1.msra.mxu0 0.0
        %1075 = vmatprep.subr.mxu0 0.0
        %1076 = vmatpush1.msra.mxu0 0.0
        %1077 = vmatprep.subr.mxu0 0.0
        %1078 = vmatpush1.msra.mxu0 0.0
        %1079 = vmatprep.subr.mxu0 0.0
        %1080 = vmatpush1.msra.mxu0 0.0
        %1081 = vmatprep.subr.mxu0 0.0
        %1082 = vmatpush1.msra.mxu0 0.0
        %1083 = vmatprep.subr.mxu0 0.0
        %1084 = vmatpush1.msra.mxu0 0.0
        %1085 = vmatprep.subr.mxu0 0.0
        %1086 = vmatpush1.msra.mxu0 0.0
        %1087 = vmatprep.subr.mxu0 0.0
        %1088 = vmatpush1.msra.mxu0 0.0
        %1089 = vmatprep.subr.mxu0 0.0
        %1090 = vmatpush1.msra.mxu0 0.0
        %1091 = vmatprep.subr.mxu0 0.0
        %1092 = vmatpush1.msra.mxu0 0.0
        %1093 = vmatprep.subr.mxu0 0.0
        %1094 = vmatpush1.msra.mxu0 0.0
        %1095 = vmatprep.subr.mxu0 0.0
        %1096 = vmatpush1.msra.mxu0 0.0
        %1097 = vmatprep.subr.mxu0 0.0
        %1098 = vmatpush1.msra.mxu0 0.0
        %1099 = vmatprep.mubr.f32.mxu0 0.0
        %1100 = vmatmul.mubr.f32.gmra.mrb[0].mxu0 %v959
        %v1101 = vpop.f32.mrb[0].mxu0
        %v1102 = vadd.f32 %v792, %v1101
        %v1103 = vpop.f32.mrb[0].mxu0
        %1104 = vdwg.mxu0
        %v1105 = vadd.f32 %v961, %v1031
        %v1106 = vadd.f32 %v962, %v1033
        %v1107 = vxor.u32 %v1105, 2147483648
        %v1108 = vxor.u32 %v1106, 2147483648
        %v1109 = vmul.f32 %v1107, 1.442695
        %v1110 = vpow.pop %v1109
        %v1111 = vmul.f32 %v1108, 1.442695
        %v1112 = vpow.pop %v1111
        %v1113 = vadd.f32 %v1110, 1.0
        %v1114 = vadd.f32 %v1112, 1.0
        %v1115 = vrcp.pop %v1113
        %v1116 = vmul.f32 1.0, %v1115
        %v1117 = vrcp.pop %v1114
        %v1118 = vmul.f32 1.0, %v1117
        %v1119 = vmul.f32 %v1116, %v1102
        %v1120 = vadd.f32 %v963, %v1119
        %v1121 = vtanh.pop %v1120
        %v1122 = vsub.f32 %v959, %v1121
        %v1123 = vmul.f32 %v1118, %v1122
        %v1124 = vadd.f32 %v1121, %v1123
        %1125 = vst [vmem:[#allocation2 + $0x8] sm:$0xff] %v1124
        %v1126 = vld [vmem:[#allocation3 + $0x30] sm:$0xff]
        %v1127 = vld [vmem:[#allocation3 + $0x38] sm:$0xff]
        %v1128 = vld [vmem:[#allocation3 + $0x40] sm:$0xff]
        %1129 = vmatprep.subr.mxu0 %v732
        %1130 = vmatpush1.msra.mxu0 %v731
        %1131 = vmatprep.subr.mxu0 %v735
        %1132 = vmatpush1.msra.mxu0 %v734
        %1133 = vmatprep.subr.mxu0 %v738
        %1134 = vmatpush1.msra.mxu0 %v737
        %1135 = vmatprep.subr.mxu0 %v741
        %1136 = vmatpush1.msra.mxu0 %v740
        %1137 = vmatprep.subr.mxu0 %v744
        %1138 = vmatpush1.msra.mxu0 %v743
        %1139 = vmatprep.subr.mxu0 %v747
        %1140 = vmatpush1.msra.mxu0 %v746
        %1141 = vmatprep.subr.mxu0 %v750
        %1142 = vmatpush1.msra.mxu0 %v749
        %1143 = vmatprep.subr.mxu0 %v753
        %1144 = vmatpush1.msra.mxu0 %v752
        %1145 = vmatprep.subr.mxu0 %v756
        %1146 = vmatpush1.msra.mxu0 %v755
        %1147 = vmatprep.subr.mxu0 %v759
        %1148 = vmatpush1.msra.mxu0 %v758
        %1149 = vmatprep.subr.mxu0 %v762
        %1150 = vmatpush1.msra.mxu0 %v761
        %1151 = vmatprep.subr.mxu0 %v765
        %1152 = vmatpush1.msra.mxu0 %v764
        %1153 = vmatprep.subr.mxu0 %v768
        %1154 = vmatpush1.msra.mxu0 %v767
        %1155 = vmatprep.subr.mxu0 %v771
        %1156 = vmatpush1.msra.mxu0 %v770
        %1157 = vmatprep.subr.mxu0 %v774
        %1158 = vmatpush1.msra.mxu0 %v773
        %1159 = vmatprep.subr.mxu0 %v777
        %1160 = vmatpush1.msra.mxu0 %v776
        %1161 = vmatprep.subr.mxu0 0.0
        %1162 = vmatpush1.msra.mxu0 0.0
        %1163 = vmatprep.subr.mxu0 0.0
        %1164 = vmatpush1.msra.mxu0 0.0
        %1165 = vmatprep.subr.mxu0 0.0
        %1166 = vmatpush1.msra.mxu0 0.0
        %1167 = vmatprep.subr.mxu0 0.0
        %1168 = vmatpush1.msra.mxu0 0.0
        %1169 = vmatprep.subr.mxu0 0.0
        %1170 = vmatpush1.msra.mxu0 0.0
        %1171 = vmatprep.subr.mxu0 0.0
        %1172 = vmatpush1.msra.mxu0 0.0
        %1173 = vmatprep.subr.mxu0 0.0
        %1174 = vmatpush1.msra.mxu0 0.0
        %1175 = vmatprep.subr.mxu0 0.0
        %1176 = vmatpush1.msra.mxu0 0.0
        %1177 = vmatprep.subr.mxu0 0.0
        %1178 = vmatpush1.msra.mxu0 0.0
        %1179 = vmatprep.subr.mxu0 0.0
        %1180 = vmatpush1.msra.mxu0 0.0
        %1181 = vmatprep.subr.mxu0 0.0
        %1182 = vmatpush1.msra.mxu0 0.0
        %1183 = vmatprep.subr.mxu0 0.0
        %1184 = vmatpush1.msra.mxu0 0.0
        %1185 = vmatprep.subr.mxu0 0.0
        %1186 = vmatpush1.msra.mxu0 0.0
        %1187 = vmatprep.subr.mxu0 0.0
        %1188 = vmatpush1.msra.mxu0 0.0
        %1189 = vmatprep.subr.mxu0 0.0
        %1190 = vmatpush1.msra.mxu0 0.0
        %1191 = vmatprep.subr.mxu0 0.0
        %1192 = vmatpush1.msra.mxu0 0.0
        %1193 = vmatprep.mubr.f32.mxu0 0.0
        %1194 = vmatmul.mubr.f32.gmra.mrb[0].mxu0 %v1124
        %v1195 = vpop.f32.mrb[0].mxu0
        %v1196 = vadd.f32 %v784, %v1195
        %v1197 = vpop.f32.mrb[0].mxu0
        %v1198 = vadd.f32 %v788, %v1197
        %1199 = vdwg.mxu0
        %1200 = vmatprep.subr.mxu0 0.0
        %1201 = vmatpush1.msra.mxu0 %v733
        %1202 = vmatprep.subr.mxu0 0.0
        %1203 = vmatpush1.msra.mxu0 %v736
        %1204 = vmatprep.subr.mxu0 0.0
        %1205 = vmatpush1.msra.mxu0 %v739
        %1206 = vmatprep.subr.mxu0 0.0
        %1207 = vmatpush1.msra.mxu0 %v742
        %1208 = vmatprep.subr.mxu0 0.0
        %1209 = vmatpush1.msra.mxu0 %v745
        %1210 = vmatprep.subr.mxu0 0.0
        %1211 = vmatpush1.msra.mxu0 %v748
        %1212 = vmatprep.subr.mxu0 0.0
        %1213 = vmatpush1.msra.mxu0 %v751
        %1214 = vmatprep.subr.mxu0 0.0
        %1215 = vmatpush1.msra.mxu0 %v754
        %1216 = vmatprep.subr.mxu0 0.0
        %1217 = vmatpush1.msra.mxu0 %v757
        %1218 = vmatprep.subr.mxu0 0.0
        %1219 = vmatpush1.msra.mxu0 %v760
        %1220 = vmatprep.subr.mxu0 0.0
        %1221 = vmatpush1.msra.mxu0 %v763
        %1222 = vmatprep.subr.mxu0 0.0
        %1223 = vmatpush1.msra.mxu0 %v766
        %1224 = vmatprep.subr.mxu0 0.0
        %1225 = vmatpush1.msra.mxu0 %v769
        %1226 = vmatprep.subr.mxu0 0.0
        %1227 = vmatpush1.msra.mxu0 %v772
        %1228 = vmatprep.subr.mxu0 0.0
        %1229 = vmatpush1.msra.mxu0 %v775
        %1230 = vmatprep.subr.mxu0 0.0
        %1231 = vmatpush1.msra.mxu0 %v778
        %1232 = vmatprep.subr.mxu0 0.0
        %1233 = vmatpush1.msra.mxu0 0.0
        %1234 = vmatprep.subr.mxu0 0.0
        %1235 = vmatpush1.msra.mxu0 0.0
        %1236 = vmatprep.subr.mxu0 0.0
        %1237 = vmatpush1.msra.mxu0 0.0
        %1238 = vmatprep.subr.mxu0 0.0
        %1239 = vmatpush1.msra.mxu0 0.0
        %1240 = vmatprep.subr.mxu0 0.0
        %1241 = vmatpush1.msra.mxu0 0.0
        %1242 = vmatprep.subr.mxu0 0.0
        %1243 = vmatpush1.msra.mxu0 0.0
        %1244 = vmatprep.subr.mxu0 0.0
        %1245 = vmatpush1.msra.mxu0 0.0
        %1246 = vmatprep.subr.mxu0 0.0
        %1247 = vmatpush1.msra.mxu0 0.0
        %1248 = vmatprep.subr.mxu0 0.0
        %1249 = vmatpush1.msra.mxu0 0.0
        %1250 = vmatprep.subr.mxu0 0.0
        %1251 = vmatpush1.msra.mxu0 0.0
        %1252 = vmatprep.subr.mxu0 0.0
        %1253 = vmatpush1.msra.mxu0 0.0
        %1254 = vmatprep.subr.mxu0 0.0
        %1255 = vmatpush1.msra.mxu0 0.0
        %1256 = vmatprep.subr.mxu0 0.0
        %1257 = vmatpush1.msra.mxu0 0.0
        %1258 = vmatprep.subr.mxu0 0.0
        %1259 = vmatpush1.msra.mxu0 0.0
        %1260 = vmatprep.subr.mxu0 0.0
        %1261 = vmatpush1.msra.mxu0 0.0
        %1262 = vmatprep.subr.mxu0 0.0
        %1263 = vmatpush1.msra.mxu0 0.0
        %1264 = vmatprep.mubr.f32.mxu0 0.0
        %1265 = vmatmul.mubr.f32.gmra.mrb[0].mxu0 %v1124
        %v1266 = vpop.f32.mrb[0].mxu0
        %v1267 = vadd.f32 %v792, %v1266
        %v1268 = vpop.f32.mrb[0].mxu0
        %1269 = vdwg.mxu0
        %v1270 = vadd.f32 %v1126, %v1196
        %v1271 = vadd.f32 %v1127, %v1198
        %v1272 = vxor.u32 %v1270, 2147483648
        %v1273 = vxor.u32 %v1271, 2147483648
        %v1274 = vmul.f32 %v1272, 1.442695
        %v1275 = vpow.pop %v1274
        %v1276 = vmul.f32 %v1273, 1.442695
        %v1277 = vpow.pop %v1276
        %v1278 = vadd.f32 %v1275, 1.0
        %v1279 = vadd.f32 %v1277, 1.0
        %v1280 = vrcp.pop %v1278
        %v1281 = vmul.f32 1.0, %v1280
        %v1282 = vrcp.pop %v1279
        %v1283 = vmul.f32 1.0, %v1282
        %v1284 = vmul.f32 %v1281, %v1267
        %v1285 = vadd.f32 %v1128, %v1284
        %v1286 = vtanh.pop %v1285
        %v1287 = vsub.f32 %v1124, %v1286
        %v1288 = vmul.f32 %v1283, %v1287
        %v1289 = vadd.f32 %v1286, %v1288
        %1290 = vst [vmem:[#allocation2 + $0x10] sm:$0xff] %v1289
        %v1291 = vld [vmem:[#allocation3 + $0x48] sm:$0xff]
        %v1292 = vld [vmem:[#allocation3 + $0x50] sm:$0xff]
        %v1293 = vld [vmem:[#allocation3 + $0x58] sm:$0xff]
        %1294 = vmatprep.subr.mxu0 %v732
        %1295 = vmatpush1.msra.mxu0 %v731
        %1296 = vmatprep.subr.mxu0 %v735
        %1297 = vmatpush1.msra.mxu0 %v734
        %1298 = vmatprep.subr.mxu0 %v738
        %1299 = vmatpush1.msra.mxu0 %v737
        %1300 = vmatprep.subr.mxu0 %v741
        %1301 = vmatpush1.msra.mxu0 %v740
        %1302 = vmatprep.subr.mxu0 %v744
        %1303 = vmatpush1.msra.mxu0 %v743
        %1304 = vmatprep.subr.mxu0 %v747
        %1305 = vmatpush1.msra.mxu0 %v746
        %1306 = vmatprep.subr.mxu0 %v750
        %1307 = vmatpush1.msra.mxu0 %v749
        %1308 = vmatprep.subr.mxu0 %v753
        %1309 = vmatpush1.msra.mxu0 %v752
        %1310 = vmatprep.subr.mxu0 %v756
        %1311 = vmatpush1.msra.mxu0 %v755
        %1312 = vmatprep.subr.mxu0 %v759
        %1313 = vmatpush1.msra.mxu0 %v758
        %1314 = vmatprep.subr.mxu0 %v762
        %1315 = vmatpush1.msra.mxu0 %v761
        %1316 = vmatprep.subr.mxu0 %v765
        %1317 = vmatpush1.msra.mxu0 %v764
        %1318 = vmatprep.subr.mxu0 %v768
        %1319 = vmatpush1.msra.mxu0 %v767
        %1320 = vmatprep.subr.mxu0 %v771
        %1321 = vmatpush1.msra.mxu0 %v770
        %1322 = vmatprep.subr.mxu0 %v774
        %1323 = vmatpush1.msra.mxu0 %v773
        %1324 = vmatprep.subr.mxu0 %v777
        %1325 = vmatpush1.msra.mxu0 %v776
        %1326 = vmatprep.subr.mxu0 0.0
        %1327 = vmatpush1.msra.mxu0 0.0
        %1328 = vmatprep.subr.mxu0 0.0
        %1329 = vmatpush1.msra.mxu0 0.0
        %1330 = vmatprep.subr.mxu0 0.0
        %1331 = vmatpush1.msra.mxu0 0.0
        %1332 = vmatprep.subr.mxu0 0.0
        %1333 = vmatpush1.msra.mxu0 0.0
        %1334 = vmatprep.subr.mxu0 0.0
        %1335 = vmatpush1.msra.mxu0 0.0
        %1336 = vmatprep.subr.mxu0 0.0
        %1337 = vmatpush1.msra.mxu0 0.0
        %1338 = vmatprep.subr.mxu0 0.0
        %1339 = vmatpush1.msra.mxu0 0.0
        %1340 = vmatprep.subr.mxu0 0.0
        %1341 = vmatpush1.msra.mxu0 0.0
        %1342 = vmatprep.subr.mxu0 0.0
        %1343 = vmatpush1.msra.mxu0 0.0
        %1344 = vmatprep.subr.mxu0 0.0
        %1345 = vmatpush1.msra.mxu0 0.0
        %1346 = vmatprep.subr.mxu0 0.0
        %1347 = vmatpush1.msra.mxu0 0.0
        %1348 = vmatprep.subr.mxu0 0.0
        %1349 = vmatpush1.msra.mxu0 0.0
        %1350 = vmatprep.subr.mxu0 0.0
        %1351 = vmatpush1.msra.mxu0 0.0
        %1352 = vmatprep.subr.mxu0 0.0
        %1353 = vmatpush1.msra.mxu0 0.0
        %1354 = vmatprep.subr.mxu0 0.0
        %1355 = vmatpush1.msra.mxu0 0.0
        %1356 = vmatprep.subr.mxu0 0.0
        %1357 = vmatpush1.msra.mxu0 0.0
        %1358 = vmatprep.mubr.f32.mxu0 0.0
        %1359 = vmatmul.mubr.f32.gmra.mrb[0].mxu0 %v1289
        %v1360 = vpop.f32.mrb[0].mxu0
        %v1361 = vadd.f32 %v784, %v1360
        %v1362 = vpop.f32.mrb[0].mxu0
        %v1363 = vadd.f32 %v788, %v1362
        %1364 = vdwg.mxu0
        %1365 = vmatprep.subr.mxu0 0.0
        %1366 = vmatpush1.msra.mxu0 %v733
        %1367 = vmatprep.subr.mxu0 0.0
        %1368 = vmatpush1.msra.mxu0 %v736
        %1369 = vmatprep.subr.mxu0 0.0
        %1370 = vmatpush1.msra.mxu0 %v739
        %1371 = vmatprep.subr.mxu0 0.0
        %1372 = vmatpush1.msra.mxu0 %v742
        %1373 = vmatprep.subr.mxu0 0.0
        %1374 = vmatpush1.msra.mxu0 %v745
        %1375 = vmatprep.subr.mxu0 0.0
        %1376 = vmatpush1.msra.mxu0 %v748
        %1377 = vmatprep.subr.mxu0 0.0
        %1378 = vmatpush1.msra.mxu0 %v751
        %1379 = vmatprep.subr.mxu0 0.0
        %1380 = vmatpush1.msra.mxu0 %v754
        %1381 = vmatprep.subr.mxu0 0.0
        %1382 = vmatpush1.msra.mxu0 %v757
        %1383 = vmatprep.subr.mxu0 0.0
        %1384 = vmatpush1.msra.mxu0 %v760
        %1385 = vmatprep.subr.mxu0 0.0
        %1386 = vmatpush1.msra.mxu0 %v763
        %1387 = vmatprep.subr.mxu0 0.0
        %1388 = vmatpush1.msra.mxu0 %v766
        %1389 = vmatprep.subr.mxu0 0.0
        %1390 = vmatpush1.msra.mxu0 %v769
        %1391 = vmatprep.subr.mxu0 0.0
        %1392 = vmatpush1.msra.mxu0 %v772
        %1393 = vmatprep.subr.mxu0 0.0
        %1394 = vmatpush1.msra.mxu0 %v775
        %1395 = vmatprep.subr.mxu0 0.0
        %1396 = vmatpush1.msra.mxu0 %v778
        %1397 = vmatprep.subr.mxu0 0.0
        %1398 = vmatpush1.msra.mxu0 0.0
        %1399 = vmatprep.subr.mxu0 0.0
        %1400 = vmatpush1.msra.mxu0 0.0
        %1401 = vmatprep.subr.mxu0 0.0
        %1402 = vmatpush1.msra.mxu0 0.0
        %1403 = vmatprep.subr.mxu0 0.0
        %1404 = vmatpush1.msra.mxu0 0.0
        %1405 = vmatprep.subr.mxu0 0.0
        %1406 = vmatpush1.msra.mxu0 0.0
        %1407 = vmatprep.subr.mxu0 0.0
        %1408 = vmatpush1.msra.mxu0 0.0
        %1409 = vmatprep.subr.mxu0 0.0
        %1410 = vmatpush1.msra.mxu0 0.0
        %1411 = vmatprep.subr.mxu0 0.0
        %1412 = vmatpush1.msra.mxu0 0.0
        %1413 = vmatprep.subr.mxu0 0.0
        %1414 = vmatpush1.msra.mxu0 0.0
        %1415 = vmatprep.subr.mxu0 0.0
        %1416 = vmatpush1.msra.mxu0 0.0
        %1417 = vmatprep.subr.mxu0 0.0
        %1418 = vmatpush1.msra.mxu0 0.0
        %1419 = vmatprep.subr.mxu0 0.0
        %1420 = vmatpush1.msra.mxu0 0.0
        %1421 = vmatprep.subr.mxu0 0.0
        %1422 = vmatpush1.msra.mxu0 0.0
        %1423 = vmatprep.subr.mxu0 0.0
        %1424 = vmatpush1.msra.mxu0 0.0
        %1425 = vmatprep.subr.mxu0 0.0
        %1426 = vmatpush1.msra.mxu0 0.0
        %1427 = vmatprep.subr.mxu0 0.0
        %1428 = vmatpush1.msra.mxu0 0.0
        %1429 = vmatprep.mubr.f32.mxu0 0.0
        %1430 = vmatmul.mubr.f32.gmra.mrb[0].mxu0 %v1289
        %v1431 = vpop.f32.mrb[0].mxu0
        %v1432 = vadd.f32 %v792, %v1431
        %v1433 = vpop.f32.mrb[0].mxu0
        %1434 = vdwg.mxu0
        %v1435 = vadd.f32 %v1291, %v1361
        %v1436 = vadd.f32 %v1292, %v1363
        %v1437 = vxor.u32 %v1435, 2147483648
        %v1438 = vxor.u32 %v1436, 2147483648
        %v1439 = vmul.f32 %v1437, 1.442695
        %v1440 = vpow.pop %v1439
        %v1441 = vmul.f32 %v1438, 1.442695
        %v1442 = vpow.pop %v1441
        %v1443 = vadd.f32 %v1440, 1.0
        %v1444 = vadd.f32 %v1442, 1.0
        %v1445 = vrcp.pop %v1443
        %v1446 = vmul.f32 1.0, %v1445
        %v1447 = vrcp.pop %v1444
        %v1448 = vmul.f32 1.0, %v1447
        %v1449 = vmul.f32 %v1446, %v1432
        %v1450 = vadd.f32 %v1293, %v1449
        %v1451 = vtanh.pop %v1450
        %v1452 = vsub.f32 %v1289, %v1451
        %v1453 = vmul.f32 %v1448, %v1452
        %v1454 = vadd.f32 %v1451, %v1453
        %1455 = vst [vmem:[#allocation2 + $0x18] sm:$0xff] %v1454
        %v1456 = vld [vmem:[#allocation3 + $0x60] sm:$0xff]
        %v1457 = vld [vmem:[#allocation3 + $0x68] sm:$0xff]
        %v1458 = vld [vmem:[#allocation3 + $0x70] sm:$0xff]
        %1459 = vmatprep.subr.mxu0 %v732
        %1460 = vmatpush1.msra.mxu0 %v731
        %1461 = vmatprep.subr.mxu0 %v735
        %1462 = vmatpush1.msra.mxu0 %v734
        %1463 = vmatprep.subr.mxu0 %v738
        %1464 = vmatpush1.msra.mxu0 %v737
        %1465 = vmatprep.subr.mxu0 %v741
        %1466 = vmatpush1.msra.mxu0 %v740
        %1467 = vmatprep.subr.mxu0 %v744
        %1468 = vmatpush1.msra.mxu0 %v743
        %1469 = vmatprep.subr.mxu0 %v747
        %1470 = vmatpush1.msra.mxu0 %v746
        %1471 = vmatprep.subr.mxu0 %v750
        %1472 = vmatpush1.msra.mxu0 %v749
        %1473 = vmatprep.subr.mxu0 %v753
        %1474 = vmatpush1.msra.mxu0 %v752
        %1475 = vmatprep.subr.mxu0 %v756
        %1476 = vmatpush1.msra.mxu0 %v755
        %1477 = vmatprep.subr.mxu0 %v759
        %1478 = vmatpush1.msra.mxu0 %v758
        %1479 = vmatprep.subr.mxu0 %v762
        %1480 = vmatpush1.msra.mxu0 %v761
        %1481 = vmatprep.subr.mxu0 %v765
        %1482 = vmatpush1.msra.mxu0 %v764
        %1483 = vmatprep.subr.mxu0 %v768
        %1484 = vmatpush1.msra.mxu0 %v767
        %1485 = vmatprep.subr.mxu0 %v771
        %1486 = vmatpush1.msra.mxu0 %v770
        %1487 = vmatprep.subr.mxu0 %v774
        %1488 = vmatpush1.msra.mxu0 %v773
        %1489 = vmatprep.subr.mxu0 %v777
        %1490 = vmatpush1.msra.mxu0 %v776
        %1491 = vmatprep.subr.mxu0 0.0
        %1492 = vmatpush1.msra.mxu0 0.0
        %1493 = vmatprep.subr.mxu0 0.0
        %1494 = vmatpush1.msra.mxu0 0.0
        %1495 = vmatprep.subr.mxu0 0.0
        %1496 = vmatpush1.msra.mxu0 0.0
        %1497 = vmatprep.subr.mxu0 0.0
        %1498 = vmatpush1.msra.mxu0 0.0
        %1499 = vmatprep.subr.mxu0 0.0
        %1500 = vmatpush1.msra.mxu0 0.0
        %1501 = vmatprep.subr.mxu0 0.0
        %1502 = vmatpush1.msra.mxu0 0.0
        %1503 = vmatprep.subr.mxu0 0.0
        %1504 = vmatpush1.msra.mxu0 0.0
        %1505 = vmatprep.subr.mxu0 0.0
        %1506 = vmatpush1.msra.mxu0 0.0
        %1507 = vmatprep.subr.mxu0 0.0
        %1508 = vmatpush1.msra.mxu0 0.0
        %1509 = vmatprep.subr.mxu0 0.0
        %1510 = vmatpush1.msra.mxu0 0.0
        %1511 = vmatprep.subr.mxu0 0.0
        %1512 = vmatpush1.msra.mxu0 0.0
        %1513 = vmatprep.subr.mxu0 0.0
        %1514 = vmatpush1.msra.mxu0 0.0
        %1515 = vmatprep.subr.mxu0 0.0
        %1516 = vmatpush1.msra.mxu0 0.0
        %1517 = vmatprep.subr.mxu0 0.0
        %1518 = vmatpush1.msra.mxu0 0.0
        %1519 = vmatprep.subr.mxu0 0.0
        %1520 = vmatpush1.msra.mxu0 0.0
        %1521 = vmatprep.subr.mxu0 0.0
        %1522 = vmatpush1.msra.mxu0 0.0
        %1523 = vmatprep.mubr.f32.mxu0 0.0
        %1524 = vmatmul.mubr.f32.gmra.mrb[0].mxu0 %v1454
        %v1525 = vpop.f32.mrb[0].mxu0
        %v1526 = vadd.f32 %v784, %v1525
        %v1527 = vpop.f32.mrb[0].mxu0
        %v1528 = vadd.f32 %v788, %v1527
        %1529 = vdwg.mxu0
        %1530 = vmatprep.subr.mxu0 0.0
        %1531 = vmatpush1.msra.mxu0 %v733
        %1532 = vmatprep.subr.mxu0 0.0
        %1533 = vmatpush1.msra.mxu0 %v736
        %1534 = vmatprep.subr.mxu0 0.0
        %1535 = vmatpush1.msra.mxu0 %v739
        %1536 = vmatprep.subr.mxu0 0.0
        %1537 = vmatpush1.msra.mxu0 %v742
        %1538 = vmatprep.subr.mxu0 0.0
        %1539 = vmatpush1.msra.mxu0 %v745
        %1540 = vmatprep.subr.mxu0 0.0
        %1541 = vmatpush1.msra.mxu0 %v748
        %1542 = vmatprep.subr.mxu0 0.0
        %1543 = vmatpush1.msra.mxu0 %v751
        %1544 = vmatprep.subr.mxu0 0.0
        %1545 = vmatpush1.msra.mxu0 %v754
        %1546 = vmatprep.subr.mxu0 0.0
        %1547 = vmatpush1.msra.mxu0 %v757
        %1548 = vmatprep.subr.mxu0 0.0
        %1549 = vmatpush1.msra.mxu0 %v760
        %1550 = vmatprep.subr.mxu0 0.0
        %1551 = vmatpush1.msra.mxu0 %v763
        %1552 = vmatprep.subr.mxu0 0.0
        %1553 = vmatpush1.msra.mxu0 %v766
        %1554 = vmatprep.subr.mxu0 0.0
        %1555 = vmatpush1.msra.mxu0 %v769
        %1556 = vmatprep.subr.mxu0 0.0
        %1557 = vmatpush1.msra.mxu0 %v772
        %1558 = vmatprep.subr.mxu0 0.0
        %1559 = vmatpush1.msra.mxu0 %v775
        %1560 = vmatprep.subr.mxu0 0.0
        %1561 = vmatpush1.msra.mxu0 %v778
        %1562 = vmatprep.subr.mxu0 0.0
        %1563 = vmatpush1.msra.mxu0 0.0
        %1564 = vmatprep.subr.mxu0 0.0
        %1565 = vmatpush1.msra.mxu0 0.0
        %1566 = vmatprep.subr.mxu0 0.0
        %1567 = vmatpush1.msra.mxu0 0.0
        %1568 = vmatprep.subr.mxu0 0.0
        %1569 = vmatpush1.msra.mxu0 0.0
        %1570 = vmatprep.subr.mxu0 0.0
        %1571 = vmatpush1.msra.mxu0 0.0
        %1572 = vmatprep.subr.mxu0 0.0
        %1573 = vmatpush1.msra.mxu0 0.0
        %1574 = vmatprep.subr.mxu0 0.0
        %1575 = vmatpush1.msra.mxu0 0.0
        %1576 = vmatprep.subr.mxu0 0.0
        %1577 = vmatpush1.msra.mxu0 0.0
        %1578 = vmatprep.subr.mxu0 0.0
        %1579 = vmatpush1.msra.mxu0 0.0
        %1580 = vmatprep.subr.mxu0 0.0
        %1581 = vmatpush1.msra.mxu0 0.0
        %1582 = vmatprep.subr.mxu0 0.0
        %1583 = vmatpush1.msra.mxu0 0.0
        %1584 = vmatprep.subr.mxu0 0.0
        %1585 = vmatpush1.msra.mxu0 0.0
        %1586 = vmatprep.subr.mxu0 0.0
        %1587 = vmatpush1.msra.mxu0 0.0
        %1588 = vmatprep.subr.mxu0 0.0
        %1589 = vmatpush1.msra.mxu0 0.0
        %1590 = vmatprep.subr.mxu0 0.0
        %1591 = vmatpush1.msra.mxu0 0.0
        %1592 = vmatprep.subr.mxu0 0.0
        %1593 = vmatpush1.msra.mxu0 0.0
        %1594 = vmatprep.mubr.f32.mxu0 0.0
        %1595 = vmatmul.mubr.f32.gmra.mrb[0].mxu0 %v1454
        %v1596 = vpop.f32.mrb[0].mxu0
        %v1597 = vadd.f32 %v792, %v1596
        %v1598 = vpop.f32.mrb[0].mxu0
        %1599 = vdwg.mxu0
        %v1600 = vadd.f32 %v1456, %v1526
        %v1601 = vadd.f32 %v1457, %v1528
        %v1602 = vxor.u32 %v1600, 2147483648
        %v1603 = vxor.u32 %v1601, 2147483648
        %v1604 = vmul.f32 %v1602, 1.442695
        %v1605 = vpow.pop %v1604
        %v1606 = vmul.f32 %v1603, 1.442695
        %v1607 = vpow.pop %v1606
        %v1608 = vadd.f32 %v1605, 1.0
        %v1609 = vadd.f32 %v1607, 1.0
        %v1610 = vrcp.pop %v1608
        %v1611 = vmul.f32 1.0, %v1610
        %v1612 = vrcp.pop %v1609
        %v1613 = vmul.f32 1.0, %v1612
        %v1614 = vmul.f32 %v1611, %v1597
        %v1615 = vadd.f32 %v1458, %v1614
        %v1616 = vtanh.pop %v1615
        %v1617 = vsub.f32 %v1454, %v1616
        %v1618 = vmul.f32 %v1613, %v1617
        %v1619 = vadd.f32 %v1616, %v1618
        %1620 = vst [vmem:[#allocation2 + $0x20] sm:$0xff] %v1619
        %v1621 = vld [vmem:[#allocation3 + $0x78] sm:$0xff]
        %v1622 = vld [vmem:[#allocation3 + $0x80] sm:$0xff]
        %v1623 = vld [vmem:[#allocation3 + $0x88] sm:$0xff]
        %1624 = vmatprep.subr.mxu0 %v732
        %1625 = vmatpush1.msra.mxu0 %v731
        %1626 = vmatprep.subr.mxu0 %v735
        %1627 = vmatpush1.msra.mxu0 %v734
        %1628 = vmatprep.subr.mxu0 %v738
        %1629 = vmatpush1.msra.mxu0 %v737
        %1630 = vmatprep.subr.mxu0 %v741
        %1631 = vmatpush1.msra.mxu0 %v740
        %1632 = vmatprep.subr.mxu0 %v744
        %1633 = vmatpush1.msra.mxu0 %v743
        %1634 = vmatprep.subr.mxu0 %v747
        %1635 = vmatpush1.msra.mxu0 %v746
        %1636 = vmatprep.subr.mxu0 %v750
        %1637 = vmatpush1.msra.mxu0 %v749
        %1638 = vmatprep.subr.mxu0 %v753
        %1639 = vmatpush1.msra.mxu0 %v752
        %1640 = vmatprep.subr.mxu0 %v756
        %1641 = vmatpush1.msra.mxu0 %v755
        %1642 = vmatprep.subr.mxu0 %v759
        %1643 = vmatpush1.msra.mxu0 %v758
        %1644 = vmatprep.subr.mxu0 %v762
        %1645 = vmatpush1.msra.mxu0 %v761
        %1646 = vmatprep.subr.mxu0 %v765
        %1647 = vmatpush1.msra.mxu0 %v764
        %1648 = vmatprep.subr.mxu0 %v768
        %1649 = vmatpush1.msra.mxu0 %v767
        %1650 = vmatprep.subr.mxu0 %v771
        %1651 = vmatpush1.msra.mxu0 %v770
        %1652 = vmatprep.subr.mxu0 %v774
        %1653 = vmatpush1.msra.mxu0 %v773
        %1654 = vmatprep.subr.mxu0 %v777
        %1655 = vmatpush1.msra.mxu0 %v776
        %1656 = vmatprep.subr.mxu0 0.0
        %1657 = vmatpush1.msra.mxu0 0.0
        %1658 = vmatprep.subr.mxu0 0.0
        %1659 = vmatpush1.msra.mxu0 0.0
        %1660 = vmatprep.subr.mxu0 0.0
        %1661 = vmatpush1.msra.mxu0 0.0
        %1662 = vmatprep.subr.mxu0 0.0
        %1663 = vmatpush1.msra.mxu0 0.0
        %1664 = vmatprep.subr.mxu0 0.0
        %1665 = vmatpush1.msra.mxu0 0.0
        %1666 = vmatprep.subr.mxu0 0.0
        %1667 = vmatpush1.msra.mxu0 0.0
        %1668 = vmatprep.subr.mxu0 0.0
        %1669 = vmatpush1.msra.mxu0 0.0
        %1670 = vmatprep.subr.mxu0 0.0
        %1671 = vmatpush1.msra.mxu0 0.0
        %1672 = vmatprep.subr.mxu0 0.0
        %1673 = vmatpush1.msra.mxu0 0.0
        %1674 = vmatprep.subr.mxu0 0.0
        %1675 = vmatpush1.msra.mxu0 0.0
        %1676 = vmatprep.subr.mxu0 0.0
        %1677 = vmatpush1.msra.mxu0 0.0
        %1678 = vmatprep.subr.mxu0 0.0
        %1679 = vmatpush1.msra.mxu0 0.0
        %1680 = vmatprep.subr.mxu0 0.0
        %1681 = vmatpush1.msra.mxu0 0.0
        %1682 = vmatprep.subr.mxu0 0.0
        %1683 = vmatpush1.msra.mxu0 0.0
        %1684 = vmatprep.subr.mxu0 0.0
        %1685 = vmatpush1.msra.mxu0 0.0
        %1686 = vmatprep.subr.mxu0 0.0
        %1687 = vmatpush1.msra.mxu0 0.0
        %1688 = vmatprep.mubr.f32.mxu0 0.0
        %1689 = vmatmul.mubr.f32.gmra.mrb[0].mxu0 %v1619
        %v1690 = vpop.f32.mrb[0].mxu0
        %v1691 = vadd.f32 %v784, %v1690
        %v1692 = vpop.f32.mrb[0].mxu0
        %v1693 = vadd.f32 %v788, %v1692
        %1694 = vdwg.mxu0
        %1695 = vmatprep.subr.mxu0 0.0
        %1696 = vmatpush1.msra.mxu0 %v733
        %1697 = vmatprep.subr.mxu0 0.0
        %1698 = vmatpush1.msra.mxu0 %v736
        %1699 = vmatprep.subr.mxu0 0.0
        %1700 = vmatpush1.msra.mxu0 %v739
        %1701 = vmatprep.subr.mxu0 0.0
        %1702 = vmatpush1.msra.mxu0 %v742
        %1703 = vmatprep.subr.mxu0 0.0
        %1704 = vmatpush1.msra.mxu0 %v745
        %1705 = vmatprep.subr.mxu0 0.0
        %1706 = vmatpush1.msra.mxu0 %v748
        %1707 = vmatprep.subr.mxu0 0.0
        %1708 = vmatpush1.msra.mxu0 %v751
        %1709 = vmatprep.subr.mxu0 0.0
        %1710 = vmatpush1.msra.mxu0 %v754
        %1711 = vmatprep.subr.mxu0 0.0
        %1712 = vmatpush1.msra.mxu0 %v757
        %1713 = vmatprep.subr.mxu0 0.0
        %1714 = vmatpush1.msra.mxu0 %v760
        %1715 = vmatprep.subr.mxu0 0.0
        %1716 = vmatpush1.msra.mxu0 %v763
        %1717 = vmatprep.subr.mxu0 0.0
        %1718 = vmatpush1.msra.mxu0 %v766
        %1719 = vmatprep.subr.mxu0 0.0
        %1720 = vmatpush1.msra.mxu0 %v769
        %1721 = vmatprep.subr.mxu0 0.0
        %1722 = vmatpush1.msra.mxu0 %v772
        %1723 = vmatprep.subr.mxu0 0.0
        %1724 = vmatpush1.msra.mxu0 %v775
        %1725 = vmatprep.subr.mxu0 0.0
        %1726 = vmatpush1.msra.mxu0 %v778
        %1727 = vmatprep.subr.mxu0 0.0
        %1728 = vmatpush1.msra.mxu0 0.0
        %1729 = vmatprep.subr.mxu0 0.0
        %1730 = vmatpush1.msra.mxu0 0.0
        %1731 = vmatprep.subr.mxu0 0.0
        %1732 = vmatpush1.msra.mxu0 0.0
        %1733 = vmatprep.subr.mxu0 0.0
        %1734 = vmatpush1.msra.mxu0 0.0
        %1735 = vmatprep.subr.mxu0 0.0
        %1736 = vmatpush1.msra.mxu0 0.0
        %1737 = vmatprep.subr.mxu0 0.0
        %1738 = vmatpush1.msra.mxu0 0.0
        %1739 = vmatprep.subr.mxu0 0.0
        %1740 = vmatpush1.msra.mxu0 0.0
        %1741 = vmatprep.subr.mxu0 0.0
        %1742 = vmatpush1.msra.mxu0 0.0
        %1743 = vmatprep.subr.mxu0 0.0
        %1744 = vmatpush1.msra.mxu0 0.0
        %1745 = vmatprep.subr.mxu0 0.0
        %1746 = vmatpush1.msra.mxu0 0.0
        %1747 = vmatprep.subr.mxu0 0.0
        %1748 = vmatpush1.msra.mxu0 0.0
        %1749 = vmatprep.subr.mxu0 0.0
        %1750 = vmatpush1.msra.mxu0 0.0
        %1751 = vmatprep.subr.mxu0 0.0
        %1752 = vmatpush1.msra.mxu0 0.0
        %1753 = vmatprep.subr.mxu0 0.0
        %1754 = vmatpush1.msra.mxu0 0.0
        %1755 = vmatprep.subr.mxu0 0.0
        %1756 = vmatpush1.msra.mxu0 0.0
        %1757 = vmatprep.subr.mxu0 0.0
        %1758 = vmatpush1.msra.mxu0 0.0
        %1759 = vmatprep.mubr.f32.mxu0 0.0
        %1760 = vmatmul.mubr.f32.gmra.mrb[0].mxu0 %v1619
        %v1761 = vpop.f32.mrb[0].mxu0
        %v1762 = vadd.f32 %v792, %v1761
        %v1763 = vpop.f32.mrb[0].mxu0
        %1764 = vdwg.mxu0
        %v1765 = vadd.f32 %v1621, %v1691
        %v1766 = vadd.f32 %v1622, %v1693
        %v1767 = vxor.u32 %v1765, 2147483648
        %v1768 = vxor.u32 %v1766, 2147483648
        %v1769 = vmul.f32 %v1767, 1.442695
        %v1770 = vpow.pop %v1769
        %v1771 = vmul.f32 %v1768, 1.442695
        %v1772 = vpow.pop %v1771
        %v1773 = vadd.f32 %v1770, 1.0
        %v1774 = vadd.f32 %v1772, 1.0
        %v1775 = vrcp.pop %v1773
        %v1776 = vmul.f32 1.0, %v1775
        %v1777 = vrcp.pop %v1774
        %v1778 = vmul.f32 1.0, %v1777
        %v1779 = vmul.f32 %v1776, %v1762
        %v1780 = vadd.f32 %v1623, %v1779
        %v1781 = vtanh.pop %v1780
        %v1782 = vsub.f32 %v1619, %v1781
        %v1783 = vmul.f32 %v1778, %v1782
        %v1784 = vadd.f32 %v1781, %v1783
        %1785 = vst [vmem:[#allocation2 + $0x28] sm:$0xff] %v1784
        %v1786 = vld [vmem:[#allocation3 + $0x90] sm:$0xff]
        %v1787 = vld [vmem:[#allocation3 + $0x98] sm:$0xff]
        %v1788 = vld [vmem:[#allocation3 + $0xa0] sm:$0xff]
        %1789 = vmatprep.subr.mxu0 %v732
        %1790 = vmatpush1.msra.mxu0 %v731
        %1791 = vmatprep.subr.mxu0 %v735
        %1792 = vmatpush1.msra.mxu0 %v734
        %1793 = vmatprep.subr.mxu0 %v738
        %1794 = vmatpush1.msra.mxu0 %v737
        %1795 = vmatprep.subr.mxu0 %v741
        %1796 = vmatpush1.msra.mxu0 %v740
        %1797 = vmatprep.subr.mxu0 %v744
        %1798 = vmatpush1.msra.mxu0 %v743
        %1799 = vmatprep.subr.mxu0 %v747
        %1800 = vmatpush1.msra.mxu0 %v746
        %1801 = vmatprep.subr.mxu0 %v750
        %1802 = vmatpush1.msra.mxu0 %v749
        %1803 = vmatprep.subr.mxu0 %v753
        %1804 = vmatpush1.msra.mxu0 %v752
        %1805 = vmatprep.subr.mxu0 %v756
        %1806 = vmatpush1.msra.mxu0 %v755
        %1807 = vmatprep.subr.mxu0 %v759
        %1808 = vmatpush1.msra.mxu0 %v758
        %1809 = vmatprep.subr.mxu0 %v762
        %1810 = vmatpush1.msra.mxu0 %v761
        %1811 = vmatprep.subr.mxu0 %v765
        %1812 = vmatpush1.msra.mxu0 %v764
        %1813 = vmatprep.subr.mxu0 %v768
        %1814 = vmatpush1.msra.mxu0 %v767
        %1815 = vmatprep.subr.mxu0 %v771
        %1816 = vmatpush1.msra.mxu0 %v770
        %1817 = vmatprep.subr.mxu0 %v774
        %1818 = vmatpush1.msra.mxu0 %v773
        %1819 = vmatprep.subr.mxu0 %v777
        %1820 = vmatpush1.msra.mxu0 %v776
        %1821 = vmatprep.subr.mxu0 0.0
        %1822 = vmatpush1.msra.mxu0 0.0
        %1823 = vmatprep.subr.mxu0 0.0
        %1824 = vmatpush1.msra.mxu0 0.0
        %1825 = vmatprep.subr.mxu0 0.0
        %1826 = vmatpush1.msra.mxu0 0.0
        %1827 = vmatprep.subr.mxu0 0.0
        %1828 = vmatpush1.msra.mxu0 0.0
        %1829 = vmatprep.subr.mxu0 0.0
        %1830 = vmatpush1.msra.mxu0 0.0
        %1831 = vmatprep.subr.mxu0 0.0
        %1832 = vmatpush1.msra.mxu0 0.0
        %1833 = vmatprep.subr.mxu0 0.0
        %1834 = vmatpush1.msra.mxu0 0.0
        %1835 = vmatprep.subr.mxu0 0.0
        %1836 = vmatpush1.msra.mxu0 0.0
        %1837 = vmatprep.subr.mxu0 0.0
        %1838 = vmatpush1.msra.mxu0 0.0
        %1839 = vmatprep.subr.mxu0 0.0
        %1840 = vmatpush1.msra.mxu0 0.0
        %1841 = vmatprep.subr.mxu0 0.0
        %1842 = vmatpush1.msra.mxu0 0.0
        %1843 = vmatprep.subr.mxu0 0.0
        %1844 = vmatpush1.msra.mxu0 0.0
        %1845 = vmatprep.subr.mxu0 0.0
        %1846 = vmatpush1.msra.mxu0 0.0
        %1847 = vmatprep.subr.mxu0 0.0
        %1848 = vmatpush1.msra.mxu0 0.0
        %1849 = vmatprep.subr.mxu0 0.0
        %1850 = vmatpush1.msra.mxu0 0.0
        %1851 = vmatprep.subr.mxu0 0.0
        %1852 = vmatpush1.msra.mxu0 0.0
        %1853 = vmatprep.mubr.f32.mxu0 0.0
        %1854 = vmatmul.mubr.f32.gmra.mrb[0].mxu0 %v1784
        %v1855 = vpop.f32.mrb[0].mxu0
        %v1856 = vadd.f32 %v784, %v1855
        %v1857 = vpop.f32.mrb[0].mxu0
        %v1858 = vadd.f32 %v788, %v1857
        %1859 = vdwg.mxu0
        %1860 = vmatprep.subr.mxu0 0.0
        %1861 = vmatpush1.msra.mxu0 %v733
        %1862 = vmatprep.subr.mxu0 0.0
        %1863 = vmatpush1.msra.mxu0 %v736
        %1864 = vmatprep.subr.mxu0 0.0
        %1865 = vmatpush1.msra.mxu0 %v739
        %1866 = vmatprep.subr.mxu0 0.0
        %1867 = vmatpush1.msra.mxu0 %v742
        %1868 = vmatprep.subr.mxu0 0.0
        %1869 = vmatpush1.msra.mxu0 %v745
        %1870 = vmatprep.subr.mxu0 0.0
        %1871 = vmatpush1.msra.mxu0 %v748
        %1872 = vmatprep.subr.mxu0 0.0
        %1873 = vmatpush1.msra.mxu0 %v751
        %1874 = vmatprep.subr.mxu0 0.0
        %1875 = vmatpush1.msra.mxu0 %v754
        %1876 = vmatprep.subr.mxu0 0.0
        %1877 = vmatpush1.msra.mxu0 %v757
        %1878 = vmatprep.subr.mxu0 0.0
        %1879 = vmatpush1.msra.mxu0 %v760
        %1880 = vmatprep.subr.mxu0 0.0
        %1881 = vmatpush1.msra.mxu0 %v763
        %1882 = vmatprep.subr.mxu0 0.0
        %1883 = vmatpush1.msra.mxu0 %v766
        %1884 = vmatprep.subr.mxu0 0.0
        %1885 = vmatpush1.msra.mxu0 %v769
        %1886 = vmatprep.subr.mxu0 0.0
        %1887 = vmatpush1.msra.mxu0 %v772
        %1888 = vmatprep.subr.mxu0 0.0
        %1889 = vmatpush1.msra.mxu0 %v775
        %1890 = vmatprep.subr.mxu0 0.0
        %1891 = vmatpush1.msra.mxu0 %v778
        %1892 = vmatprep.subr.mxu0 0.0
        %1893 = vmatpush1.msra.mxu0 0.0
        %1894 = vmatprep.subr.mxu0 0.0
        %1895 = vmatpush1.msra.mxu0 0.0
        %1896 = vmatprep.subr.mxu0 0.0
        %1897 = vmatpush1.msra.mxu0 0.0
        %1898 = vmatprep.subr.mxu0 0.0
        %1899 = vmatpush1.msra.mxu0 0.0
        %1900 = vmatprep.subr.mxu0 0.0
        %1901 = vmatpush1.msra.mxu0 0.0
        %1902 = vmatprep.subr.mxu0 0.0
        %1903 = vmatpush1.msra.mxu0 0.0
        %1904 = vmatprep.subr.mxu0 0.0
        %1905 = vmatpush1.msra.mxu0 0.0
        %1906 = vmatprep.subr.mxu0 0.0
        %1907 = vmatpush1.msra.mxu0 0.0
        %1908 = vmatprep.subr.mxu0 0.0
        %1909 = vmatpush1.msra.mxu0 0.0
        %1910 = vmatprep.subr.mxu0 0.0
        %1911 = vmatpush1.msra.mxu0 0.0
        %1912 = vmatprep.subr.mxu0 0.0
        %1913 = vmatpush1.msra.mxu0 0.0
        %1914 = vmatprep.subr.mxu0 0.0
        %1915 = vmatpush1.msra.mxu0 0.0
        %1916 = vmatprep.subr.mxu0 0.0
        %1917 = vmatpush1.msra.mxu0 0.0
        %1918 = vmatprep.subr.mxu0 0.0
        %1919 = vmatpush1.msra.mxu0 0.0
        %1920 = vmatprep.subr.mxu0 0.0
        %1921 = vmatpush1.msra.mxu0 0.0
        %1922 = vmatprep.subr.mxu0 0.0
        %1923 = vmatpush1.msra.mxu0 0.0
        %1924 = vmatprep.mubr.f32.mxu0 0.0
        %1925 = vmatmul.mubr.f32.gmra.mrb[0].mxu0 %v1784
        %v1926 = vpop.f32.mrb[0].mxu0
        %v1927 = vadd.f32 %v792, %v1926
        %v1928 = vpop.f32.mrb[0].mxu0
        %1929 = vdwg.mxu0
        %v1930 = vadd.f32 %v1786, %v1856
        %v1931 = vadd.f32 %v1787, %v1858
        %v1932 = vxor.u32 %v1930, 2147483648
        %v1933 = vxor.u32 %v1931, 2147483648
        %v1934 = vmul.f32 %v1932, 1.442695
        %v1935 = vpow.pop %v1934
        %v1936 = vmul.f32 %v1933, 1.442695
        %v1937 = vpow.pop %v1936
        %v1938 = vadd.f32 %v1935, 1.0
        %v1939 = vadd.f32 %v1937, 1.0
        %v1940 = vrcp.pop %v1938
        %v1941 = vmul.f32 1.0, %v1940
        %v1942 = vrcp.pop %v1939
        %v1943 = vmul.f32 1.0, %v1942
        %v1944 = vmul.f32 %v1941, %v1927
        %v1945 = vadd.f32 %v1788, %v1944
        %v1946 = vtanh.pop %v1945
        %v1947 = vsub.f32 %v1784, %v1946
        %v1948 = vmul.f32 %v1943, %v1947
        %v1949 = vadd.f32 %v1946, %v1948
        %1950 = vst [vmem:[#allocation2 + $0x30] sm:$0xff] %v1949
        %v1951 = vld [vmem:[#allocation3 + $0xa8] sm:$0xff]
        %v1952 = vld [vmem:[#allocation3 + $0xb0] sm:$0xff]
        %v1953 = vld [vmem:[#allocation3 + $0xb8] sm:$0xff]
        %1954 = vmatprep.subr.mxu0 %v732
        %1955 = vmatpush1.msra.mxu0 %v731
        %1956 = vmatprep.subr.mxu0 %v735
        %1957 = vmatpush1.msra.mxu0 %v734
        %1958 = vmatprep.subr.mxu0 %v738
        %1959 = vmatpush1.msra.mxu0 %v737
        %1960 = vmatprep.subr.mxu0 %v741
        %1961 = vmatpush1.msra.mxu0 %v740
        %1962 = vmatprep.subr.mxu0 %v744
        %1963 = vmatpush1.msra.mxu0 %v743
        %1964 = vmatprep.subr.mxu0 %v747
        %1965 = vmatpush1.msra.mxu0 %v746
        %1966 = vmatprep.subr.mxu0 %v750
        %1967 = vmatpush1.msra.mxu0 %v749
        %1968 = vmatprep.subr.mxu0 %v753
        %1969 = vmatpush1.msra.mxu0 %v752
        %1970 = vmatprep.subr.mxu0 %v756
        %1971 = vmatpush1.msra.mxu0 %v755
        %1972 = vmatprep.subr.mxu0 %v759
        %1973 = vmatpush1.msra.mxu0 %v758
        %1974 = vmatprep.subr.mxu0 %v762
        %1975 = vmatpush1.msra.mxu0 %v761
        %1976 = vmatprep.subr.mxu0 %v765
        %1977 = vmatpush1.msra.mxu0 %v764
        %1978 = vmatprep.subr.mxu0 %v768
        %1979 = vmatpush1.msra.mxu0 %v767
        %1980 = vmatprep.subr.mxu0 %v771
        %1981 = vmatpush1.msra.mxu0 %v770
        %1982 = vmatprep.subr.mxu0 %v774
        %1983 = vmatpush1.msra.mxu0 %v773
        %1984 = vmatprep.subr.mxu0 %v777
        %1985 = vmatpush1.msra.mxu0 %v776
        %1986 = vmatprep.subr.mxu0 0.0
        %1987 = vmatpush1.msra.mxu0 0.0
        %1988 = vmatprep.subr.mxu0 0.0
        %1989 = vmatpush1.msra.mxu0 0.0
        %1990 = vmatprep.subr.mxu0 0.0
        %1991 = vmatpush1.msra.mxu0 0.0
        %1992 = vmatprep.subr.mxu0 0.0
        %1993 = vmatpush1.msra.mxu0 0.0
        %1994 = vmatprep.subr.mxu0 0.0
        %1995 = vmatpush1.msra.mxu0 0.0
        %1996 = vmatprep.subr.mxu0 0.0
        %1997 = vmatpush1.msra.mxu0 0.0
        %1998 = vmatprep.subr.mxu0 0.0
        %1999 = vmatpush1.msra.mxu0 0.0
        %2000 = vmatprep.subr.mxu0 0.0
        %2001 = vmatpush1.msra.mxu0 0.0
        %2002 = vmatprep.subr.mxu0 0.0
        %2003 = vmatpush1.msra.mxu0 0.0
        %2004 = vmatprep.subr.mxu0 0.0
        %2005 = vmatpush1.msra.mxu0 0.0
        %2006 = vmatprep.subr.mxu0 0.0
        %2007 = vmatpush1.msra.mxu0 0.0
        %2008 = vmatprep.subr.mxu0 0.0
        %2009 = vmatpush1.msra.mxu0 0.0
        %2010 = vmatprep.subr.mxu0 0.0
        %2011 = vmatpush1.msra.mxu0 0.0
        %2012 = vmatprep.subr.mxu0 0.0
        %2013 = vmatpush1.msra.mxu0 0.0
        %2014 = vmatprep.subr.mxu0 0.0
        %2015 = vmatpush1.msra.mxu0 0.0
        %2016 = vmatprep.subr.mxu0 0.0
        %2017 = vmatpush1.msra.mxu0 0.0
        %2018 = vmatprep.mubr.f32.mxu0 0.0
        %2019 = vmatmul.mubr.f32.gmra.mrb[0].mxu0 %v1949
        %v2020 = vpop.f32.mrb[0].mxu0
        %v2021 = vadd.f32 %v784, %v2020
        %v2022 = vpop.f32.mrb[0].mxu0
        %v2023 = vadd.f32 %v788, %v2022
        %2024 = vdwg.mxu0
        %2025 = vmatprep.subr.mxu0 0.0
        %2026 = vmatpush1.msra.mxu0 %v733
        %2027 = vmatprep.subr.mxu0 0.0
        %2028 = vmatpush1.msra.mxu0 %v736
        %2029 = vmatprep.subr.mxu0 0.0
        %2030 = vmatpush1.msra.mxu0 %v739
        %2031 = vmatprep.subr.mxu0 0.0
        %2032 = vmatpush1.msra.mxu0 %v742
        %2033 = vmatprep.subr.mxu0 0.0
        %2034 = vmatpush1.msra.mxu0 %v745
        %2035 = vmatprep.subr.mxu0 0.0
        %2036 = vmatpush1.msra.mxu0 %v748
        %2037 = vmatprep.subr.mxu0 0.0
        %2038 = vmatpush1.msra.mxu0 %v751
        %2039 = vmatprep.subr.mxu0 0.0
        %2040 = vmatpush1.msra.mxu0 %v754
        %2041 = vmatprep.subr.mxu0 0.0
        %2042 = vmatpush1.msra.mxu0 %v757
        %2043 = vmatprep.subr.mxu0 0.0
        %2044 = vmatpush1.msra.mxu0 %v760
        %2045 = vmatprep.subr.mxu0 0.0
        %2046 = vmatpush1.msra.mxu0 %v763
        %2047 = vmatprep.subr.mxu0 0.0
        %2048 = vmatpush1.msra.mxu0 %v766
        %2049 = vmatprep.subr.mxu0 0.0
        %2050 = vmatpush1.msra.mxu0 %v769
        %2051 = vmatprep.subr.mxu0 0.0
        %2052 = vmatpush1.msra.mxu0 %v772
        %2053 = vmatprep.subr.mxu0 0.0
        %2054 = vmatpush1.msra.mxu0 %v775
        %2055 = vmatprep.subr.mxu0 0.0
        %2056 = vmatpush1.msra.mxu0 %v778
        %2057 = vmatprep.subr.mxu0 0.0
        %2058 = vmatpush1.msra.mxu0 0.0
        %2059 = vmatprep.subr.mxu0 0.0
        %2060 = vmatpush1.msra.mxu0 0.0
        %2061 = vmatprep.subr.mxu0 0.0
        %2062 = vmatpush1.msra.mxu0 0.0
        %2063 = vmatprep.subr.mxu0 0.0
        %2064 = vmatpush1.msra.mxu0 0.0
        %2065 = vmatprep.subr.mxu0 0.0
        %2066 = vmatpush1.msra.mxu0 0.0
        %2067 = vmatprep.subr.mxu0 0.0
        %2068 = vmatpush1.msra.mxu0 0.0
        %2069 = vmatprep.subr.mxu0 0.0
        %2070 = vmatpush1.msra.mxu0 0.0
        %2071 = vmatprep.subr.mxu0 0.0
        %2072 = vmatpush1.msra.mxu0 0.0
        %2073 = vmatprep.subr.mxu0 0.0
        %2074 = vmatpush1.msra.mxu0 0.0
        %2075 = vmatprep.subr.mxu0 0.0
        %2076 = vmatpush1.msra.mxu0 0.0
        %2077 = vmatprep.subr.mxu0 0.0
        %2078 = vmatpush1.msra.mxu0 0.0
        %2079 = vmatprep.subr.mxu0 0.0
        %2080 = vmatpush1.msra.mxu0 0.0
        %2081 = vmatprep.subr.mxu0 0.0
        %2082 = vmatpush1.msra.mxu0 0.0
        %2083 = vmatprep.subr.mxu0 0.0
        %2084 = vmatpush1.msra.mxu0 0.0
        %2085 = vmatprep.subr.mxu0 0.0
        %2086 = vmatpush1.msra.mxu0 0.0
        %2087 = vmatprep.subr.mxu0 0.0
        %2088 = vmatpush1.msra.mxu0 0.0
        %2089 = vmatprep.mubr.f32.mxu0 0.0
        %2090 = vmatmul.mubr.f32.gmra.mrb[0].mxu0 %v1949
        %v2091 = vpop.f32.mrb[0].mxu0
        %v2092 = vadd.f32 %v792, %v2091
        %v2093 = vpop.f32.mrb[0].mxu0
        %2094 = vdwg.mxu0
        %v2095 = vadd.f32 %v1951, %v2021
        %v2096 = vadd.f32 %v1952, %v2023
        %v2097 = vxor.u32 %v2095, 2147483648
        %v2098 = vxor.u32 %v2096, 2147483648
        %v2099 = vmul.f32 %v2097, 1.442695
        %v2100 = vpow.pop %v2099
        %v2101 = vmul.f32 %v2098, 1.442695
        %v2102 = vpow.pop %v2101
        %v2103 = vadd.f32 %v2100, 1.0
        %v2104 = vadd.f32 %v2102, 1.0
        %v2105 = vrcp.pop %v2103
        %v2106 = vmul.f32 1.0, %v2105
        %v2107 = vrcp.pop %v2104
        %v2108 = vmul.f32 1.0, %v2107
        %v2109 = vmul.f32 %v2106, %v2092
        %v2110 = vadd.f32 %v1953, %v2109
        %v2111 = vtanh.pop %v2110
        %v2112 = vsub.f32 %v1949, %v2111
        %v2113 = vmul.f32 %v2108, %v2112
        %v2114 = vadd.f32 %v2111, %v2113
        %2115 = vst [vmem:[#allocation2 + $0x38] sm:$0xff] %v2114
        %2116 = vst [vmem:[%s395] sm:$0xff] %v2114
        %p2117 = scmp.eq.s32.totalorder %s26, 1
        // Predicated region
        $region61: #{char_rnn_forward.1} parent=47 // pred_check
          %p2118 = pneg %p2117
        $region62: #{char_rnn_forward.1} parent=47 // pred_check_branch
          %2120 = sbr.rel (%p2118) target = $region64
        $region63: #{char_rnn_forward.1} parent=47 // pred_region
          %v2121 = vld [vmem:[%s5] sm:$0xff]
          %v2122 = vld [vmem:[%s5 + $0x8] sm:$0xff]
          %v2123 = vld [vmem:[%s5 + $0x10] sm:$0xff]
          %v2124 = vld [vmem:[%s5 + $0x18] sm:$0xff]
          %v2125 = vld [vmem:[%s5 + $0x20] sm:$0xff]
          %v2126 = vld [vmem:[%s5 + $0x28] sm:$0xff]
          %v2127 = vld [vmem:[%s5 + $0x30] sm:$0xff]
          %v2128 = vld [vmem:[%s5 + $0x38] sm:$0xff]
          %v2129 = vld [vmem:[%s5 + $0x40] sm:$0xff]
          %v2130 = vld [vmem:[%s5 + $0x48] sm:$0xff]
          %v2131 = vld [vmem:[%s5 + $0x50] sm:$0xff]
          %v2132 = vld [vmem:[%s5 + $0x58] sm:$0xff]
          %v2133 = vld [vmem:[%s5 + $0x60] sm:$0xff]
          %v2134 = vld [vmem:[%s5 + $0x68] sm:$0xff]
          %v2135 = vld [vmem:[%s5 + $0x70] sm:$0xff]
          %v2136 = vld [vmem:[%s5 + $0x78] sm:$0xff]
          %v2137 = vld [vmem:[%s6] sm:$0x1]
          %v2139 = vlaneseq
          %v2140 = vshrl.u32 %v2139, 7
          %v2141 = vsub.s32 0, %v2140
          %v2142 = vrot.slane %v2137, %v2141
          %2144 = vmatprep.subr.mxu0 0.0
          %2145 = vmatpush1.msra.mxu0 %v2121
          %2146 = vmatprep.subr.mxu0 0.0
          %2147 = vmatpush1.msra.mxu0 %v2122
          %2148 = vmatprep.subr.mxu0 0.0
          %2149 = vmatpush1.msra.mxu0 %v2123
          %2150 = vmatprep.subr.mxu0 0.0
          %2151 = vmatpush1.msra.mxu0 %v2124
          %2152 = vmatprep.subr.mxu0 0.0
          %2153 = vmatpush1.msra.mxu0 %v2125
          %2154 = vmatprep.subr.mxu0 0.0
          %2155 = vmatpush1.msra.mxu0 %v2126
          %2156 = vmatprep.subr.mxu0 0.0
          %2157 = vmatpush1.msra.mxu0 %v2127
          %2158 = vmatprep.subr.mxu0 0.0
          %2159 = vmatpush1.msra.mxu0 %v2128
          %2160 = vmatprep.subr.mxu0 0.0
          %2161 = vmatpush1.msra.mxu0 %v2129
          %2162 = vmatprep.subr.mxu0 0.0
          %2163 = vmatpush1.msra.mxu0 %v2130
          %2164 = vmatprep.subr.mxu0 0.0
          %2165 = vmatpush1.msra.mxu0 %v2131
          %2166 = vmatprep.subr.mxu0 0.0
          %2167 = vmatpush1.msra.mxu0 %v2132
          %2168 = vmatprep.subr.mxu0 0.0
          %2169 = vmatpush1.msra.mxu0 %v2133
          %2170 = vmatprep.subr.mxu0 0.0
          %2171 = vmatpush1.msra.mxu0 %v2134
          %2172 = vmatprep.subr.mxu0 0.0
          %2173 = vmatpush1.msra.mxu0 %v2135
          %2174 = vmatprep.subr.mxu0 0.0
          %2175 = vmatpush1.msra.mxu0 %v2136
          %2176 = vmatprep.subr.mxu0 0.0
          %2177 = vmatpush1.msra.mxu0 0.0
          %2178 = vmatprep.subr.mxu0 0.0
          %2179 = vmatpush1.msra.mxu0 0.0
          %2180 = vmatprep.subr.mxu0 0.0
          %2181 = vmatpush1.msra.mxu0 0.0
          %2182 = vmatprep.subr.mxu0 0.0
          %2183 = vmatpush1.msra.mxu0 0.0
          %2184 = vmatprep.subr.mxu0 0.0
          %2185 = vmatpush1.msra.mxu0 0.0
          %2186 = vmatprep.subr.mxu0 0.0
          %2187 = vmatpush1.msra.mxu0 0.0
          %2188 = vmatprep.subr.mxu0 0.0
          %2189 = vmatpush1.msra.mxu0 0.0
          %2190 = vmatprep.subr.mxu0 0.0
          %2191 = vmatpush1.msra.mxu0 0.0
          %2192 = vmatprep.subr.mxu0 0.0
          %2193 = vmatpush1.msra.mxu0 0.0
          %2194 = vmatprep.subr.mxu0 0.0
          %2195 = vmatpush1.msra.mxu0 0.0
          %2196 = vmatprep.subr.mxu0 0.0
          %2197 = vmatpush1.msra.mxu0 0.0
          %2198 = vmatprep.subr.mxu0 0.0
          %2199 = vmatpush1.msra.mxu0 0.0
          %2200 = vmatprep.subr.mxu0 0.0
          %2201 = vmatpush1.msra.mxu0 0.0
          %2202 = vmatprep.subr.mxu0 0.0
          %2203 = vmatpush1.msra.mxu0 0.0
          %2204 = vmatprep.subr.mxu0 0.0
          %2205 = vmatpush1.msra.mxu0 0.0
          %2206 = vmatprep.subr.mxu0 0.0
          %2207 = vmatpush1.msra.mxu0 0.0
          %2208 = vmatprep.mubr.f32.mxu0 0.0
          %2209 = vmatmul.mubr.f32.gmra.mrb[0].mxu0 %v2114
          %v2210 = vpop.f32.mrb[0].mxu0
          %v2211 = vadd.f32 %v2142, %v2210
          %v2212 = vpop.f32.mrb[0].mxu0
          %2213 = vdwg.mxu0
          %2214 = vst [vmem:[%s7] sm:$0xff] %v2211
        $region64: #{char_rnn_forward.1} parent=47 // pred_fallthru
          _
        %p2215 = scmp.lt.s32.totalorder %s26, 1
        %s2216 = scalar_select %p2215, %s26, 1
        %s2217 = smul.addr %s2216, 8
        %s2218 = scalar_lea.vmem %s8, %s2217
        // Predicated region
        $region65: #{char_rnn_forward.1} parent=47 // pred_check
          %p2219 = pneg %p206
        $region66: #{char_rnn_forward.1} parent=47 // pred_check_branch
          %2221 = sbr.rel (%p2219) target = $region68
        $region67: #{char_rnn_forward.1} parent=47 // pred_region
          _
        $region68: #{char_rnn_forward.1} parent=47 // pred_fallthru
          _
        // Predicated region
        $region69: #{char_rnn_forward.1} parent=47 // pred_check
          %p2222 = pneg %p232
        $region70: #{char_rnn_forward.1} parent=47 // pred_check_branch
          %2224 = sbr.rel (%p2222) target = $region72
        $region71: #{char_rnn_forward.1} parent=47 // pred_region
          _
        $region72: #{char_rnn_forward.1} parent=47 // pred_fallthru
          _
        // Predicated region
        $region73: #{char_rnn_forward.1} parent=47 // pred_check
          %p2225 = pneg %p206
        $region74: #{char_rnn_forward.1} parent=47 // pred_check_branch
          %2227 = sbr.rel (%p2225) target = $region76
        $region75: #{char_rnn_forward.1} parent=47 // pred_region
          _
        $region76: #{char_rnn_forward.1} parent=47 // pred_fallthru
          _
      $region48: #{char_rnn_forward.1} parent=5 // pred_fallthru
        _
      %p2228 = scmp.le.s32.totalorder 2, %s21
      // Predicated region
      $region77: #{char_rnn_forward.1} parent=5 // pred_check
        %p2229 = pneg %p2228
      $region78: #{char_rnn_forward.1} parent=5 // pred_check_branch
        %2231 = sbr.rel (%p2229) target = $region80
      $region79: #{char_rnn_forward.1} parent=5 // pred_region
        %s2232 = ssub.s32 %s21, 2
        // Predicated region
        $region81: #{char_rnn_forward.1} parent=79 // pred_check
          %p2233 = pneg %p238
        $region82: #{char_rnn_forward.1} parent=79 // pred_check_branch
          %2235 = sbr.rel (%p2233) target = $region84
        $region83: #{char_rnn_forward.1} parent=79 // pred_region
          %p2236 = scmp.lt.s32.totalorder %s27, 1
          %s2237 = scalar_select %p2236, %s27, 1
          %s2238 = smul.addr %s2237, 8
          %s2239 = scalar_lea.vmem %s8, %s2238
        $region84: #{char_rnn_forward.1} parent=79 // pred_fallthru
          _
      $region80: #{char_rnn_forward.1} parent=5 // pred_fallthru
        _
    $region6: #{char_rnn_forward.1} parent=1 // loop_footer
      %s25 = sadd.s32 1, %s21
    $region7: #{char_rnn_forward.1} parent=1 // loop_footer_branch
      %20 = sbr.rel target = $region3
    $region8: #{char_rnn_forward.1} parent=1 // loop_exit
      _
    %2240 = vsyncpa [#allocation5], 1
    %s2241 = scalar_lea.sflag [#allocation5], 1
    %2242 = vsyncpa %s2241, 1
    %2243 = vsyncpa [#allocation7], 1
    %s2244 = scalar_lea.sflag [#allocation7], 1
    %2245 = vsyncpa %s2244, 1

</llo_original>
